<compile_context>
chip_gen: v7x
topology: tpu7x:2x2x1
jax: 0.10.0
libtpu: 0.0.40
codegen_flags: <defaults>
</compile_context>

<pallas_src>
import functools
import math

import numpy as np
import jax
import jax.numpy as jnp
from jax.experimental import pallas as pl
from jax.experimental.pallas import tpu as pltpu


# ----------------------------------------------------------------------------
# Kernel: one (batch, row-tile) step, everything resident in VMEM
# ----------------------------------------------------------------------------
def _ffn2_kernel(x_ref, w_in_ref, w_dw_ref, mask_ref, w_out_ref, o_ref, *, W):
    """VMEM tiles:
    x_ref    : (Cin, ext)   bf16  tile rows + 1 halo row above/below, flattened
                                  over (rows, W), zero-padded to ext (mult. 128)
    w_in_ref : (C2, Cin)    bf16  project_in weight (C2 = 2*hidden)
    w_dw_ref : (C2, 9)      f32   depthwise 3x3 weight, taps flattened 3*i+j
    mask_ref : (2, ext)     f32   [0]: 0 where w==0, [1]: 0 where w==W-1
    w_out_ref: (Cout, hidden) bf16 project_out weight, pre-scaled by 0.5 (GELU)
    o_ref    : (Cout, Rt*W) f32   interior rows only (halo dropped)
    """
    ext = x_ref.shape[-1]
    interior = o_ref.shape[-1]
    hidden = w_out_ref.shape[-1]

    # ---- project_in: 1x1 conv as bf16 (C2, Cin) @ (Cin, ext) on the MXU -----
    y = jnp.dot(w_in_ref[...], x_ref[...], preferred_element_type=jnp.float32)

    # ---- depthwise 3x3 (stride 1, pad 1), factored per kernel row -----------
    # out[c,p] = sum_{i,j in 0..2} w[c,3i+j] * y[c, p + (i-1)*W + (j-1)]
    wt = w_dw_ref[...]
    mask_l = mask_ref[0:1, :]                                  # w-1 invalid at w==0
    mask_r = mask_ref[1:2, :]                                  # w+1 invalid at w==W-1
    ycol_m = pltpu.roll(y, shift=1, axis=1) * mask_l           # y[c, p-1]
    ycol_p = pltpu.roll(y, shift=ext - 1, axis=1) * mask_r     # y[c, p+1]
    h0 = wt[:, 0:1] * ycol_m + wt[:, 1:2] * y + wt[:, 2:3] * ycol_p  # kernel row i=0
    h1 = wt[:, 3:4] * ycol_m + wt[:, 4:5] * y + wt[:, 5:6] * ycol_p  # kernel row i=1
    h2 = wt[:, 6:7] * ycol_m + wt[:, 7:8] * y + wt[:, 8:9] * ycol_p  # kernel row i=2
    acc = (h1
           + pltpu.roll(h0, shift=W, axis=1)                   # h0[p - W]
           + pltpu.roll(h2, shift=ext - W, axis=1))            # h2[p + W]

    # ---- drop halo rows, gated GELU (0.5 folded into w_out) -----------------
    z = acc[:, W:W + interior]                                 # (C2, Rt*W)
    x1 = z[:hidden, :]
    x2 = z[hidden:, :]
    # TODO(synk): tanh-approx GELU (torch default is exact erf); deviation < 1e-3.
    c0 = math.sqrt(2.0 / math.pi)
    g = x1 * (1.0 + jnp.tanh(c0 * (x1 + 0.044715 * x1 * x1 * x1))) * x2

    # ---- project_out: bf16 (Cout, hidden) @ (hidden, Rt*W) ------------------
    o_ref[...] = jnp.dot(w_out_ref[...], g.astype(jnp.bfloat16),
                         preferred_element_type=jnp.float32)


# ----------------------------------------------------------------------------
# Wrapper helpers
# ----------------------------------------------------------------------------
def _choose_row_tile(H, W, c2):
    """Rows per tile: divides H, lane width Rt*W is a multiple of 128 (or the
    whole image), <= 2048 lanes, intermediates within a conservative VMEM budget
    (sized for v7x's 64 MiB physical VMEM)."""
    cands = [rt for rt in range(1, H + 1)
             if H % rt == 0 and ((rt * W) % 128 == 0 or rt == H)]
    budget = 12 * 1024 * 1024
    ok = [rt for rt in cands
          if rt * W <= 2048 and 8 * c2 * (rt + 2) * W * 4 <= budget]
    return max(ok) if ok else min(cands)


def _col_masks(ext_pad, W):
    """(2, ext_pad): [0] zero where w==0 (left image edge), [1] zero where w==W-1."""
    w = np.arange(ext_pad) % W
    return np.stack([(w != 0), (w != W - 1)]).astype(np.float32)


def _build_row_tiles(x, rt, ext_pad):
    """(B, Cin, H, W) -> (B, n_tiles, Cin, ext_pad) bf16; each tile carries rt rows
    plus a one-row halo above/below (zeros at the image border), flattened over
    (rows, W) and zero-padded up to ext_pad lanes."""
    B, Cin, H, W = x.shape
    n_t = H // rt
    ext = (rt + 2) * W
    xb = x.astype(jnp.bfloat16)
    xp = jnp.pad(xb, ((0, 0), (0, 0), (1, 1), (0, 0)))          # (B, Cin, H+2, W)
    if n_t == 1:
        tiles = xp.reshape(B, 1, Cin, ext)
    else:
        rows = np.arange(n_t)[:, None] * rt + np.arange(rt + 2)[None, :]
        tiles = xp[:, :, rows, :]                               # (B, Cin, n_t, rt+2, W)
        tiles = tiles.transpose(0, 2, 1, 3, 4).reshape(B, n_t, Cin, ext)
    if ext_pad != ext:
        tiles = jnp.pad(tiles, ((0, 0), (0, 0), (0, 0), (0, ext_pad - ext)))
    return tiles


def prepare_params(raw_params):
    """Torch-layout conv weights -> kernel-ready weights (once, outside the hot
    path): flatten 1x1 / depthwise kernels, cast MXU operands to bf16, fold the
    GELU 0.5 into project_out."""
    w_in = jnp.asarray(raw_params["w_in"])
    w_dw = jnp.asarray(raw_params["w_dw"])
    w_out = jnp.asarray(raw_params["w_out"])
    return {
        "w_in": w_in.reshape(w_in.shape[0], -1).astype(jnp.bfloat16),
        "w_dw": w_dw.reshape(w_dw.shape[0], -1).astype(jnp.float32),
        "w_out": (0.5 * w_out.reshape(w_out.shape[0], -1)).astype(jnp.bfloat16),
    }


@functools.partial(jax.jit, static_argnames=("row_tile",))
def feedforward2_forward(params, x, row_tile=None):
    """x: (B, dim, H, W) float32 NCHW.  Returns (B, dim, H, W) float32."""
    B, Cin, H, W = x.shape
    w_in, w_dw, w_out = params["w_in"], params["w_dw"], params["w_out"]
    C2 = w_in.shape[0]
    hidden = w_out.shape[1]
    Cout = w_out.shape[0]

    rt = _choose_row_tile(H, W, C2) if row_tile is None else int(row_tile)
    if H % rt != 0 or ((rt * W) % 128 != 0 and rt != H):
        raise ValueError(
            f"row_tile={rt} must divide H={H} and give a lane width that is a "
            f"multiple of 128 (or cover the whole image)")
    n_t = H // rt
    ext = (rt + 2) * W
    ext_pad = ((ext + 127) // 128) * 128            # lane-align the extended tile

    x_tiles = _build_row_tiles(x, rt, ext_pad)      # (B, n_t, Cin, ext_pad) bf16
    masks = jnp.asarray(_col_masks(ext_pad, W))     # (2, ext_pad) f32

    # Explicit VMEM budget so the default scoped limit never silently caps us:
    # double-buffered x/out tiles + elementwise temporaries + weights.
    est = (2 * 2 * Cin * ext_pad                    # x tile (bf16), double-buffered
           + 2 * 4 * Cout * rt * W                  # out tile (f32), double-buffered
           + 8 * 4 * C2 * ext_pad                   # y / rolls / h0..h2 / acc / gate
           + 4 * (C2 * Cin + C2 * 9 + Cout * hidden + 2 * ext_pad))
    vmem_limit = int(min(64 * 1024 * 1024, max(32 * 1024 * 1024, 4 * est)))

    kernel = functools.partial(_ffn2_kernel, W=W)
    out = pl.pallas_call(
        kernel,
        out_shape=jax.ShapeDtypeStruct((B, Cout, H * W), jnp.float32),
        grid=(B, n_t),
        in_specs=[
            pl.BlockSpec((None, None, Cin, ext_pad), lambda b, j: (b, j, 0, 0)),
            pl.BlockSpec((C2, Cin), lambda b, j: (0, 0)),
            pl.BlockSpec((C2, 9), lambda b, j: (0, 0)),
            pl.BlockSpec((2, ext_pad), lambda b, j: (0, 0)),
            pl.BlockSpec((Cout, hidden), lambda b, j: (0, 0)),
        ],
        out_specs=pl.BlockSpec((None, Cout, rt * W), lambda b, j: (b, 0, j)),
        compiler_params=pltpu.CompilerParams(
            dimension_semantics=("parallel", "parallel"),
            vmem_limit_bytes=vmem_limit),
    )(x_tiles, w_in, w_dw, masks, w_out)
    return out.reshape(B, Cout, H, W)


# ----------------------------------------------------------------------------
# Pure-JAX reference (torch semantics, f32, exact-erf GELU) for verification
# ----------------------------------------------------------------------------
def reference_forward(raw_params, x):
    w_in = jnp.asarray(raw_params["w_in"])
    w_in = w_in.reshape(w_in.shape[0], -1)
    w_dw = jnp.asarray(raw_params["w_dw"]).reshape(-1, 3, 3)
    w_out = jnp.asarray(raw_params["w_out"])
    w_out = w_out.reshape(w_out.shape[0], -1)
    hidden = w_in.shape[0] // 2
    B, Cin, H, W = x.shape

    y = jnp.einsum("oi,bihw->bohw", w_in, x)
    yp = jnp.pad(y, ((0, 0), (0, 0), (1, 1), (1, 1)))
    z = jnp.zeros_like(y)
    for i in range(3):
        for j in range(3):
            z = z + w_dw[:, i, j][None, :, None, None] * yp[:, :, i:i + H, j:j + W]
    x1, x2 = z[:, :hidden], z[:, hidden:]
    g = 0.5 * x1 * (1.0 + jax.scipy.special.erf(x1 / jnp.sqrt(2.0))) * x2
    return jnp.einsum("oi,bihw->bohw", w_out, g)


if __name__ == "__main__":
    B, dim, H, W = 2, 16, 16, 16
    ffn_expansion_factor = 2
    hidden = int(dim * ffn_expansion_factor)          # 32 -> 2*hidden = 64 channels

    key = jax.random.PRNGKey(0)
    k1, k2, k3, k4 = jax.random.split(key, 4)
    raw_params = {
        # torch Conv2d(dim, 2*hidden, 1, bias=False)     -> (2h, dim, 1, 1)
        "w_in": jax.random.normal(k1, (2 * hidden, dim, 1, 1), jnp.float32) * 0.1,
        # torch Conv2d(2h, 2h, 3, groups=2h, bias=False) -> (2h, 1, 3, 3)
        "w_dw": jax.random.normal(k2, (2 * hidden, 1, 3, 3), jnp.float32) * 0.1,
        # torch Conv2d(hidden, dim, 1, bias=False)       -> (dim, hidden, 1, 1)
        "w_out": jax.random.normal(k3, (dim, hidden, 1, 1), jnp.float32) * 0.1,
    }
    x = jax.random.normal(k4, (B, dim, H, W), jnp.float32)

    params = prepare_params(raw_params)
    ref = reference_forward(raw_params, x)

    # Default tiling (whole 16x16 image per grid step).
    out = jax.block_until_ready(feedforward2_forward(params, x))
    assert out.shape == (B, dim, H, W), out.shape
    assert bool(jnp.isfinite(out).all())
    err = float(jnp.max(jnp.abs(out - ref)))
    assert err < 2e-2, f"max abs err too large (default tiling): {err}"

    # Forced spatial tiling (2 row-tiles of 8 rows) to exercise the halo path.
    out_t = jax.block_until_ready(feedforward2_forward(params, x, row_tile=8))
    assert out_t.shape == (B, dim, H, W), out_t.shape
    err_t = float(jnp.max(jnp.abs(out_t - ref)))
    assert err_t < 2e-2, f"max abs err too large (row_tile=8): {err_t}"

    print("KERNEL_OK")
</pallas_src>

<mosaic_0001>
module attributes {stable_mosaic.version = 11 : i64} {
  func.func @_ffn2_kernel(%arg0: i32, %arg1: i32, %arg2: memref<1x1x16x384xbf16, #tpu.memory_space<vmem>>, %arg3: memref<64x16xbf16, #tpu.memory_space<vmem>>, %arg4: memref<64x9xf32, #tpu.memory_space<vmem>>, %arg5: memref<2x384xf32, #tpu.memory_space<vmem>>, %arg6: memref<16x32xbf16, #tpu.memory_space<vmem>>, %arg7: memref<1x16x256xf32, #tpu.memory_space<vmem>>) attributes {dimension_semantics = [#tpu.dimension_semantics<parallel>, #tpu.dimension_semantics<parallel>], iteration_bounds = array<i64: 2, 1>, scalar_prefetch = 0 : i64, scratch_operands = 0 : i64, tpu.core_type = #tpu.core_type<tc>, window_params = [{transform_indices = @transform_0, window_bounds = array<i64: 1, 1, 16, 384>}, {pipeline_mode = #tpu.pipeline_mode<synchronous>, transform_indices = @transform_1, window_bounds = array<i64: 64, 16>}, {pipeline_mode = #tpu.pipeline_mode<synchronous>, transform_indices = @transform_2, window_bounds = array<i64: 64, 9>}, {pipeline_mode = #tpu.pipeline_mode<synchronous>, transform_indices = @transform_3, window_bounds = array<i64: 2, 384>}, {pipeline_mode = #tpu.pipeline_mode<synchronous>, transform_indices = @transform_4, window_bounds = array<i64: 16, 32>}, {transform_indices = @transform_5, window_bounds = array<i64: 1, 16, 256>}]} {
    %c0 = arith.constant 0 : index
    %c0_0 = arith.constant 0 : index
    %0 = vector.load %arg3[%c0, %c0_0] : memref<64x16xbf16, #tpu.memory_space<vmem>>, vector<64x16xbf16>
    %c0_1 = arith.constant 0 : index
    %c0_2 = arith.constant 0 : index
    %c0_3 = arith.constant 0 : index
    %c0_4 = arith.constant 0 : index
    %1 = vector.load %arg2[%c0_1, %c0_2, %c0_3, %c0_4] : memref<1x1x16x384xbf16, #tpu.memory_space<vmem>>, vector<1x1x16x384xbf16>
    %2 = vector.shape_cast %1 : vector<1x1x16x384xbf16> to vector<16x384xbf16>
    %cst = arith.constant dense<0.000000e+00> : vector<64x384xf32>
    %3 = tpu.matmul %0, %2, %cst {dimension_numbers = #tpu.dot_dimension_numbers<[1], [0], [0], [1], [0, 0, 1, 1], [], []>} : vector<64x16xbf16>, vector<16x384xbf16>, vector<64x384xf32> -> vector<64x384xf32>
    %c0_5 = arith.constant 0 : index
    %c0_6 = arith.constant 0 : index
    %4 = vector.load %arg4[%c0_5, %c0_6] : memref<64x9xf32, #tpu.memory_space<vmem>>, vector<64x9xf32>
    %c0_7 = arith.constant 0 : index
    %c0_8 = arith.constant 0 : index
    %5 = vector.load %arg5[%c0_7, %c0_8] : memref<2x384xf32, #tpu.memory_space<vmem>>, vector<1x384xf32>
    %c1 = arith.constant 1 : index
    %c0_9 = arith.constant 0 : index
    %6 = vector.load %arg5[%c1, %c0_9] : memref<2x384xf32, #tpu.memory_space<vmem>>, vector<1x384xf32>
    %c1_i32 = arith.constant 1 : i32
    %7 = tpu.dynamic_rotate %3 by %c1_i32 dim 1 : vector<64x384xf32>, i32 -> vector<64x384xf32>
    %8 = vector.broadcast %5 : vector<1x384xf32> to vector<64x384xf32>
    %9 = arith.mulf %7, %8 : vector<64x384xf32>
    %c383_i32 = arith.constant 383 : i32
    %10 = tpu.dynamic_rotate %3 by %c383_i32 dim 1 : vector<64x384xf32>, i32 -> vector<64x384xf32>
    %11 = vector.broadcast %6 : vector<1x384xf32> to vector<64x384xf32>
    %12 = arith.mulf %10, %11 : vector<64x384xf32>
    %13 = vector.extract_strided_slice %4 {offsets = [0, 0], sizes = [64, 1], strides = [1, 1]} : vector<64x9xf32> to vector<64x1xf32>
    %14 = vector.broadcast %13 : vector<64x1xf32> to vector<64x384xf32>
    %15 = arith.mulf %14, %9 : vector<64x384xf32>
    %16 = vector.extract_strided_slice %4 {offsets = [0, 1], sizes = [64, 1], strides = [1, 1]} : vector<64x9xf32> to vector<64x1xf32>
    %17 = vector.broadcast %16 : vector<64x1xf32> to vector<64x384xf32>
    %18 = arith.mulf %17, %3 : vector<64x384xf32>
    %19 = arith.addf %15, %18 : vector<64x384xf32>
    %20 = vector.extract_strided_slice %4 {offsets = [0, 2], sizes = [64, 1], strides = [1, 1]} : vector<64x9xf32> to vector<64x1xf32>
    %21 = vector.broadcast %20 : vector<64x1xf32> to vector<64x384xf32>
    %22 = arith.mulf %21, %12 : vector<64x384xf32>
    %23 = arith.addf %19, %22 : vector<64x384xf32>
    %24 = vector.extract_strided_slice %4 {offsets = [0, 3], sizes = [64, 1], strides = [1, 1]} : vector<64x9xf32> to vector<64x1xf32>
    %25 = vector.broadcast %24 : vector<64x1xf32> to vector<64x384xf32>
    %26 = arith.mulf %25, %9 : vector<64x384xf32>
    %27 = vector.extract_strided_slice %4 {offsets = [0, 4], sizes = [64, 1], strides = [1, 1]} : vector<64x9xf32> to vector<64x1xf32>
    %28 = vector.broadcast %27 : vector<64x1xf32> to vector<64x384xf32>
    %29 = arith.mulf %28, %3 : vector<64x384xf32>
    %30 = arith.addf %26, %29 : vector<64x384xf32>
    %31 = vector.extract_strided_slice %4 {offsets = [0, 5], sizes = [64, 1], strides = [1, 1]} : vector<64x9xf32> to vector<64x1xf32>
    %32 = vector.broadcast %31 : vector<64x1xf32> to vector<64x384xf32>
    %33 = arith.mulf %32, %12 : vector<64x384xf32>
    %34 = arith.addf %30, %33 : vector<64x384xf32>
    %35 = vector.extract_strided_slice %4 {offsets = [0, 6], sizes = [64, 1], strides = [1, 1]} : vector<64x9xf32> to vector<64x1xf32>
    %36 = vector.broadcast %35 : vector<64x1xf32> to vector<64x384xf32>
    %37 = arith.mulf %36, %9 : vector<64x384xf32>
    %38 = vector.extract_strided_slice %4 {offsets = [0, 7], sizes = [64, 1], strides = [1, 1]} : vector<64x9xf32> to vector<64x1xf32>
    %39 = vector.broadcast %38 : vector<64x1xf32> to vector<64x384xf32>
    %40 = arith.mulf %39, %3 : vector<64x384xf32>
    %41 = arith.addf %37, %40 : vector<64x384xf32>
    %42 = vector.extract_strided_slice %4 {offsets = [0, 8], sizes = [64, 1], strides = [1, 1]} : vector<64x9xf32> to vector<64x1xf32>
    %43 = vector.broadcast %42 : vector<64x1xf32> to vector<64x384xf32>
    %44 = arith.mulf %43, %12 : vector<64x384xf32>
    %45 = arith.addf %41, %44 : vector<64x384xf32>
    %c16_i32 = arith.constant 16 : i32
    %46 = tpu.dynamic_rotate %23 by %c16_i32 dim 1 : vector<64x384xf32>, i32 -> vector<64x384xf32>
    %47 = arith.addf %34, %46 : vector<64x384xf32>
    %c368_i32 = arith.constant 368 : i32
    %48 = tpu.dynamic_rotate %45 by %c368_i32 dim 1 : vector<64x384xf32>, i32 -> vector<64x384xf32>
    %49 = arith.addf %47, %48 : vector<64x384xf32>
    %50 = vector.extract_strided_slice %49 {offsets = [0, 16], sizes = [64, 256], strides = [1, 1]} : vector<64x384xf32> to vector<64x256xf32>
    %51 = vector.extract_strided_slice %50 {offsets = [0, 0], sizes = [32, 256], strides = [1, 1]} : vector<64x256xf32> to vector<32x256xf32>
    %52 = vector.extract_strided_slice %50 {offsets = [32, 0], sizes = [32, 256], strides = [1, 1]} : vector<64x256xf32> to vector<32x256xf32>
    %cst_10 = arith.constant 4.471500e-02 : f32
    %53 = vector.broadcast %cst_10 : f32 to vector<32x256xf32>
    %54 = arith.mulf %53, %51 : vector<32x256xf32>
    %55 = arith.mulf %54, %51 : vector<32x256xf32>
    %56 = arith.mulf %55, %51 : vector<32x256xf32>
    %57 = arith.addf %51, %56 : vector<32x256xf32>
    %cst_11 = arith.constant 0.797884583 : f32
    %58 = vector.broadcast %cst_11 : f32 to vector<32x256xf32>
    %59 = arith.mulf %58, %57 : vector<32x256xf32>
    %60 = math.tanh %59 : vector<32x256xf32>
    %cst_12 = arith.constant 1.000000e+00 : f32
    %61 = vector.broadcast %cst_12 : f32 to vector<32x256xf32>
    %62 = arith.addf %61, %60 : vector<32x256xf32>
    %63 = arith.mulf %51, %62 : vector<32x256xf32>
    %64 = arith.mulf %63, %52 : vector<32x256xf32>
    %c0_13 = arith.constant 0 : index
    %c0_14 = arith.constant 0 : index
    %65 = vector.load %arg6[%c0_13, %c0_14] : memref<16x32xbf16, #tpu.memory_space<vmem>>, vector<16x32xbf16>
    %66 = arith.truncf %64 : vector<32x256xf32> to vector<32x256xbf16>
    %cst_15 = arith.constant dense<0.000000e+00> : vector<16x256xf32>
    %67 = tpu.matmul %65, %66, %cst_15 {dimension_numbers = #tpu.dot_dimension_numbers<[1], [0], [0], [1], [0, 0, 1, 1], [], []>} : vector<16x32xbf16>, vector<32x256xbf16>, vector<16x256xf32> -> vector<16x256xf32>
    %c0_16 = arith.constant 0 : index
    %c0_17 = arith.constant 0 : index
    %c0_18 = arith.constant 0 : index
    %68 = vector.load %arg7[%c0_16, %c0_17, %c0_18] : memref<1x16x256xf32, #tpu.memory_space<vmem>>, vector<1x16x256xf32>
    %69 = vector.shape_cast %68 : vector<1x16x256xf32> to vector<16x256xf32>
    %70 = vector.shape_cast %67 : vector<16x256xf32> to vector<1x16x256xf32>
    tpu.vector_store %arg7[%c0_16, %c0_17, %c0_18], %70 {strides = array<i32>} : memref<1x16x256xf32, #tpu.memory_space<vmem>>, vector<1x16x256xf32>,
    return
  }
  func.func @transform_0(%arg0: i32, %arg1: i32) -> (i32, i32, i32, i32) {
    %c0_i32 = arith.constant 0 : i32
    %c0_i32_0 = arith.constant 0 : i32
    %c0_i32_1 = arith.constant 0 : i32
    return %arg0, %arg1, %c0_i32, %c0_i32_0 : i32, i32, i32, i32
  }
  func.func @transform_1(%arg0: i32, %arg1: i32) -> (i32, i32) {
    %c0_i32 = arith.constant 0 : i32
    %c0_i32_0 = arith.constant 0 : i32
    %c0_i32_1 = arith.constant 0 : i32
    return %c0_i32, %c0_i32_0 : i32, i32
  }
  func.func @transform_2(%arg0: i32, %arg1: i32) -> (i32, i32) {
    %c0_i32 = arith.constant 0 : i32
    %c0_i32_0 = arith.constant 0 : i32
    %c0_i32_1 = arith.constant 0 : i32
    return %c0_i32, %c0_i32_0 : i32, i32
  }
  func.func @transform_3(%arg0: i32, %arg1: i32) -> (i32, i32) {
    %c0_i32 = arith.constant 0 : i32
    %c0_i32_0 = arith.constant 0 : i32
    %c0_i32_1 = arith.constant 0 : i32
    return %c0_i32, %c0_i32_0 : i32, i32
  }
  func.func @transform_4(%arg0: i32, %arg1: i32) -> (i32, i32) {
    %c0_i32 = arith.constant 0 : i32
    %c0_i32_0 = arith.constant 0 : i32
    %c0_i32_1 = arith.constant 0 : i32
    return %c0_i32, %c0_i32_0 : i32, i32
  }
  func.func @transform_5(%arg0: i32, %arg1: i32) -> (i32, i32, i32) {
    %c0_i32 = arith.constant 0 : i32
    %c0_i32_0 = arith.constant 0 : i32
    return %arg0, %c0_i32, %arg1 : i32, i32, i32
  }
}

</mosaic_0001>

<llo_original>
// kernel: feedforward2_forward.1
$region0: #{feedforward2_forward.1}
  #allocation0 [shape = 'u32[]', space=smem, size = 0x4, offset = 0x4, fixed_abs, tag = 'smem constant byte address 0x4 - core index']
  #allocation1 [shape = 'u32[144,128]{1,0:T(1,128)}', space=vmem, size = 0x12000, scoped, tag = 'internal scratch']
  %s0 = inlined_call_operand.vmem [shape: bf16[2,1,16,384], index: 0, kind: input, shape index: {}]
  %s1 = inlined_call_operand.vmem [shape: bf16[64,16], index: 1, kind: input, shape index: {}]
  %s2 = inlined_call_operand.vmem [shape: f32[64,9], index: 2, kind: input, shape index: {}]
  %s3 = inlined_call_operand.vmem [shape: f32[2,384], index: 3, kind: input, shape index: {}]
  %s4 = inlined_call_operand.vmem [shape: bf16[16,32], index: 4, kind: input, shape index: {}]
  %s5 = inlined_call_operand.vmem [shape: f32[2,16,256], index: 5, kind: output, shape index: {}]
  %s6 = sld [smem:[#allocation0]]
  $region53: #{feedforward2_forward.1} parent=0
    _
  %s8 = ssub.s32 1, %s6
  %s9 = scalar_select 0, %s8, %s6
  loop: start=0, step=1, limit=4
  $region2: #{feedforward2_forward.1} parent=0 // loop_pre_header
    _
  $region3: #{feedforward2_forward.1} parent=0 // loop_header
    %s11 = sphi 0, %s15
    %p12 = scmp.ge.s32.totalorder %s11, 4
    %s18 = sphi 0, %s30
    %s19 = sphi 0, %s26
    %s20 = sphi 0, %s18
    %s21 = sphi 0, %s19
    %s22 = sphi 0, %s20
    %s23 = sphi 0, %s21
    %s35 = sphi 0, %s37
    %s38 = sphi 0, %s35
    %s39 = sphi 0, %s38
    %s55 = sphi 0, %s39
    %s59 = sphi 0, %s59
    %s61 = sphi 0, %s59
    %s62 = sphi 0, %s61
    %s76 = sphi 0, %s62
    %s80 = sphi 0, %s80
    %s82 = sphi 0, %s80
    %s83 = sphi 0, %s82
    %s97 = sphi 0, %s83
    %s101 = sphi 0, %s101
    %s103 = sphi 0, %s101
    %s104 = sphi 0, %s103
    %s118 = sphi 0, %s104
    %s122 = sphi 0, %s122
    %s124 = sphi 0, %s122
    %s125 = sphi 0, %s124
    %s139 = sphi 0, %s125
    %s147 = sphi 0, %s149
    %s150 = sphi 0, %s147
    %s151 = sphi 0, %s150
    %s167 = sphi 0, %s151
  $region4: #{feedforward2_forward.1} parent=0 // loop_header_branch
    %14 = sbr.rel (%p12) target = $region8
  $region5: #{feedforward2_forward.1} parent=0 // loop_body
    %s16 = ssub.s32 %s11, 1
    %s17 = ssub.s32 %s11, 2
    %s24 = sadd.s32 1, %s19
    %p25 = scmp.ge.s32.totalorder %s24, 1
    %s26 = scalar_select %p25, 0, %s24
    %s27 = sadd.s32 1, %s18
    %s28 = scalar_select %p25, %s27, %s18
    %p29 = scmp.ge.s32.totalorder %s28, 2
    %s30 = scalar_select %p29, 0, %s28
    %s31 = ssub.s32 %s18, %s30
    %s32 = ssub.s32 %s19, %s26
    %s33 = sor.u32 %s31, %s32
    %p34 = scmp.eq.s32.totalorder %s33, 0
    %s36 = sadd.s32 %s35, 1
    %s37 = scalar_select %p34, %s35, %s36
    %p40 = pneg %p34
    %p41 = scmp.eq.s32.totalorder %s11, 1
    %p42 = por %p40, %p41
    %p43 = scmp.ne.s32.totalorder %s35, %s38
    %p44 = scmp.eq.s32.totalorder %s11, 0
    %p45 = por %p43, %p44
    %p46 = scmp.ne.s32.totalorder %s35, %s38
    %p47 = scmp.eq.s32.totalorder %s16, 1
    %p48 = por %p46, %p47
    %p49 = scmp.ne.s32.totalorder %s38, %s39
    %p50 = scmp.eq.s32.totalorder %s16, 0
    %p51 = por %p49, %p50
    %p52 = scmp.ne.s32.totalorder %s38, %s39
    %p53 = scmp.eq.s32.totalorder %s17, 1
    %p54 = por %p52, %p53
    %p56 = scmp.ne.s32.totalorder %s39, %s55
    %p57 = scmp.eq.s32.totalorder %s17, 0
    %p58 = por %p56, %p57
    %s60 = sadd.s32 %s59, 1
    %p63 = scmp.eq.s32.totalorder %s11, 1
    %p64 = scmp.ne.s32.totalorder %s59, %s61
    %p65 = scmp.eq.s32.totalorder %s11, 0
    %p66 = por %p64, %p65
    %p67 = scmp.ne.s32.totalorder %s59, %s61
    %p68 = scmp.eq.s32.totalorder %s16, 1
    %p69 = por %p67, %p68
    %p70 = scmp.ne.s32.totalorder %s61, %s62
    %p71 = scmp.eq.s32.totalorder %s16, 0
    %p72 = por %p70, %p71
    %p73 = scmp.ne.s32.totalorder %s61, %s62
    %p74 = scmp.eq.s32.totalorder %s17, 1
    %p75 = por %p73, %p74
    %p77 = scmp.ne.s32.totalorder %s62, %s76
    %p78 = scmp.eq.s32.totalorder %s17, 0
    %p79 = por %p77, %p78
    %s81 = sadd.s32 %s80, 1
    %p84 = scmp.eq.s32.totalorder %s11, 1
    %p85 = scmp.ne.s32.totalorder %s80, %s82
    %p86 = scmp.eq.s32.totalorder %s11, 0
    %p87 = por %p85, %p86
    %p88 = scmp.ne.s32.totalorder %s80, %s82
    %p89 = scmp.eq.s32.totalorder %s16, 1
    %p90 = por %p88, %p89
    %p91 = scmp.ne.s32.totalorder %s82, %s83
    %p92 = scmp.eq.s32.totalorder %s16, 0
    %p93 = por %p91, %p92
    %p94 = scmp.ne.s32.totalorder %s82, %s83
    %p95 = scmp.eq.s32.totalorder %s17, 1
    %p96 = por %p94, %p95
    %p98 = scmp.ne.s32.totalorder %s83, %s97
    %p99 = scmp.eq.s32.totalorder %s17, 0
    %p100 = por %p98, %p99
    %s102 = sadd.s32 %s101, 1
    %p105 = scmp.eq.s32.totalorder %s11, 1
    %p106 = scmp.ne.s32.totalorder %s101, %s103
    %p107 = scmp.eq.s32.totalorder %s11, 0
    %p108 = por %p106, %p107
    %p109 = scmp.ne.s32.totalorder %s101, %s103
    %p110 = scmp.eq.s32.totalorder %s16, 1
    %p111 = por %p109, %p110
    %p112 = scmp.ne.s32.totalorder %s103, %s104
    %p113 = scmp.eq.s32.totalorder %s16, 0
    %p114 = por %p112, %p113
    %p115 = scmp.ne.s32.totalorder %s103, %s104
    %p116 = scmp.eq.s32.totalorder %s17, 1
    %p117 = por %p115, %p116
    %p119 = scmp.ne.s32.totalorder %s104, %s118
    %p120 = scmp.eq.s32.totalorder %s17, 0
    %p121 = por %p119, %p120
    %s123 = sadd.s32 %s122, 1
    %p126 = scmp.eq.s32.totalorder %s11, 1
    %p127 = scmp.ne.s32.totalorder %s122, %s124
    %p128 = scmp.eq.s32.totalorder %s11, 0
    %p129 = por %p127, %p128
    %p130 = scmp.ne.s32.totalorder %s122, %s124
    %p131 = scmp.eq.s32.totalorder %s16, 1
    %p132 = por %p130, %p131
    %p133 = scmp.ne.s32.totalorder %s124, %s125
    %p134 = scmp.eq.s32.totalorder %s16, 0
    %p135 = por %p133, %p134
    %p136 = scmp.ne.s32.totalorder %s124, %s125
    %p137 = scmp.eq.s32.totalorder %s17, 1
    %p138 = por %p136, %p137
    %p140 = scmp.ne.s32.totalorder %s125, %s139
    %p141 = scmp.eq.s32.totalorder %s17, 0
    %p142 = por %p140, %p141
    %s143 = ssub.s32 %s18, %s30
    %s144 = ssub.s32 %s19, %s26
    %s145 = sor.u32 %s143, %s144
    %p146 = scmp.eq.s32.totalorder %s145, 0
    %s148 = sadd.s32 %s147, 1
    %s149 = scalar_select %p146, %s147, %s148
    %p152 = pneg %p146
    %p153 = scmp.eq.s32.totalorder %s11, 1
    %p154 = por %p152, %p153
    %p155 = scmp.ne.s32.totalorder %s147, %s150
    %p156 = scmp.eq.s32.totalorder %s11, 0
    %p157 = por %p155, %p156
    %p158 = scmp.ne.s32.totalorder %s147, %s150
    %p159 = scmp.eq.s32.totalorder %s16, 1
    %p160 = por %p158, %p159
    %p161 = scmp.ne.s32.totalorder %s150, %s151
    %p162 = scmp.eq.s32.totalorder %s16, 0
    %p163 = por %p161, %p162
    %p164 = scmp.ne.s32.totalorder %s150, %s151
    %p165 = scmp.eq.s32.totalorder %s17, 1
    %p166 = por %p164, %p165
    %p168 = scmp.ne.s32.totalorder %s151, %s167
    %p169 = scmp.eq.s32.totalorder %s17, 0
    %p170 = por %p168, %p169
    %p171 = scmp.le.s32.totalorder 1, %s11
    %p172 = scmp.lt.s32.totalorder %s11, 3
    %p173 = pnand %p171, %p172
    %p174 = pneg %p173
    // Predicated region
    $region9: #{feedforward2_forward.1} parent=5 // pred_check
      _
    $region10: #{feedforward2_forward.1} parent=5 // pred_check_branch
      %176 = sbr.rel (%p173) target = $region12
    $region11: #{feedforward2_forward.1} parent=5 // pred_region
      %s177 = ssub.s32 %s11, 1
      // Predicated region
      $region13: #{feedforward2_forward.1} parent=11 // pred_check
        %p178 = pneg %p72
      $region14: #{feedforward2_forward.1} parent=11 // pred_check_branch
        %180 = sbr.rel (%p178) target = $region16
      $region15: #{feedforward2_forward.1} parent=11 // pred_region
        _
      $region16: #{feedforward2_forward.1} parent=11 // pred_fallthru
        _
      // Predicated region
      $region17: #{feedforward2_forward.1} parent=11 // pred_check
        %p181 = pneg %p93
      $region18: #{feedforward2_forward.1} parent=11 // pred_check_branch
        %183 = sbr.rel (%p181) target = $region20
      $region19: #{feedforward2_forward.1} parent=11 // pred_region
        _
      $region20: #{feedforward2_forward.1} parent=11 // pred_fallthru
        _
      // Predicated region
      $region21: #{feedforward2_forward.1} parent=11 // pred_check
        %p184 = pneg %p114
      $region22: #{feedforward2_forward.1} parent=11 // pred_check_branch
        %186 = sbr.rel (%p184) target = $region24
      $region23: #{feedforward2_forward.1} parent=11 // pred_region
        _
      $region24: #{feedforward2_forward.1} parent=11 // pred_fallthru
        _
      // Predicated region
      $region25: #{feedforward2_forward.1} parent=11 // pred_check
        %p187 = pneg %p135
      $region26: #{feedforward2_forward.1} parent=11 // pred_check_branch
        %189 = sbr.rel (%p187) target = $region28
      $region27: #{feedforward2_forward.1} parent=11 // pred_region
        _
      $region28: #{feedforward2_forward.1} parent=11 // pred_fallthru
        _
    $region12: #{feedforward2_forward.1} parent=5 // pred_fallthru
      _
    %p190 = scmp.lt.s32.totalorder %s11, 2
    // Predicated region
    $region29: #{feedforward2_forward.1} parent=5 // pred_check
      %p191 = pneg %p190
    $region30: #{feedforward2_forward.1} parent=5 // pred_check_branch
      %193 = sbr.rel (%p191) target = $region32
    $region31: #{feedforward2_forward.1} parent=5 // pred_region
      // Predicated region
      $region33: #{feedforward2_forward.1} parent=31 // pred_check
        %p194 = pneg %p45
      $region34: #{feedforward2_forward.1} parent=31 // pred_check_branch
        %196 = sbr.rel (%p194) target = $region36
      $region35: #{feedforward2_forward.1} parent=31 // pred_region
        %p197 = scmp.lt.s32.totalorder %s18, 1
        %s198 = scalar_select %p197, %s18, 1
        %p199 = scmp.lt.s32.totalorder %s19, 0
        %s200 = scalar_select %p199, %s19, 0
        %s201 = smul.addr %s200, 6
        %s202 = smul.addr %s198, 6
        %s203 = sadd.s32 %s201, %s202
        %s204 = smul.addr %s203, 4
        %s205 = scalar_lea.vmem %s0, %s204
      $region36: #{feedforward2_forward.1} parent=31 // pred_fallthru
        _
    $region32: #{feedforward2_forward.1} parent=5 // pred_fallthru
      _
    %p206 = scmp.le.s32.totalorder 1, %s11
    %p207 = scmp.lt.s32.totalorder %s11, 3
    %p208 = pnand %p206, %p207
    %p209 = pneg %p208
    // Predicated region
    $region37: #{feedforward2_forward.1} parent=5 // pred_check
      _
    $region38: #{feedforward2_forward.1} parent=5 // pred_check_branch
      %211 = sbr.rel (%p208) target = $region40
    $region39: #{feedforward2_forward.1} parent=5 // pred_region
      %s212 = ssub.s32 %s11, 1
      %p213 = scmp.lt.s32.totalorder %s20, 1
      %s214 = scalar_select %p213, %s20, 1
      %p215 = scmp.lt.s32.totalorder %s21, 0
      %s216 = scalar_select %p215, %s21, 0
      %s217 = smul.addr %s216, 6
      %s218 = smul.addr %s214, 6
      %s219 = sadd.s32 %s217, %s218
      %s220 = smul.addr %s219, 4
      %s221 = scalar_lea.vmem %s0, %s220
      %p222 = pneg %p51
      %p223 = pneg %p48
      %p224 = pneg %p72
      %p225 = pneg %p69
      %p226 = pneg %p93
      %p227 = pneg %p90
      %p228 = pneg %p114
      %p229 = pneg %p111
      %p230 = pneg %p135
      %p231 = pneg %p132
      %p232 = pneg %p163
      %p233 = pneg %p160
      %s234 = smul.u32 2, %s21
      %p235 = scmp.lt.s32.totalorder %s20, 1
      %s236 = scalar_select %p235, %s20, 1
      %p237 = scmp.lt.s32.totalorder %s234, 1
      %s238 = scalar_select %p237, %s234, 1
      %s239 = smul.addr %s236, 4
      %s240 = sadd.s32 %s238, %s239
      %s241 = smul.addr %s240, 8
      %s242 = scalar_lea.vmem %s5, %s241
      %p243 = scmp.lt.s32.totalorder %s20, 1
      %s244 = scalar_select %p243, %s20, 1
      %p245 = scmp.lt.s32.totalorder %s21, 0
      %s246 = scalar_select %p245, %s21, 0
      %s247 = smul.addr %s246, 6
      %s248 = smul.addr %s244, 6
      %s249 = sadd.s32 %s247, %s248
      %s250 = smul.addr %s249, 4
      %s251 = scalar_lea.vmem %s0, %s250
      %s252 = smul.u32 2, %s21
      %p253 = scmp.lt.s32.totalorder %s20, 1
      %s254 = scalar_select %p253, %s20, 1
      %p255 = scmp.lt.s32.totalorder %s252, 1
      %s256 = scalar_select %p255, %s252, 1
      %s257 = smul.addr %s254, 4
      %s258 = sadd.s32 %s256, %s257
      %s259 = smul.addr %s258, 8
      %s260 = scalar_lea.vmem %s5, %s259
      %s261 = smul.u32 2, %s21
      %v263 = vld [vmem:[%s1] sm:$0xf]
      %v264 = vld [vmem:[%s1 + $0x4] sm:$0xf]
      %v265 = vld [vmem:[%s1 + $0x8] sm:$0xf]
      %v266 = vld [vmem:[%s1 + $0xc] sm:$0xf]
      %v267 = vld [vmem:[%s1 + $0x10] sm:$0xf]
      %v268 = vld [vmem:[%s1 + $0x14] sm:$0xf]
      %v269 = vld [vmem:[%s1 + $0x18] sm:$0xf]
      %v270 = vld [vmem:[%s1 + $0x1c] sm:$0xf]
      %v271 = vld [vmem:[%s251] sm:$0xff]
      %v272 = vld [vmem:[%s251 + $0x8] sm:$0xf]
      %v273 = vld [vmem:[%s251 + $0xc] sm:$0xff]
      %v274 = vld [vmem:[%s251 + $0x14] sm:$0xf]
      %v283 = vunpack.c.l.b16 %v263
      %v284 = vunpack.c.l.b16 %v264
      %v285 = vunpack.c.l.b16 %v265
      %v286 = vunpack.c.l.b16 %v266
      %v287 = vunpack.c.l.b16 %v267
      %v288 = vunpack.c.l.b16 %v268
      %v289 = vunpack.c.l.b16 %v269
      %v290 = vunpack.c.l.b16 %v270
      %v291 = vpack.c.b16 %v284, %v283
      %v292 = vpack.c.b16 %v286, %v285
      %v293 = vpack.c.b16 %v288, %v287
      %v294 = vpack.c.b16 %v290, %v289
      %v299 = vunpack.c.l.b16 %v271
      %v300 = vunpack.c.h.b16 %v271
      %v301 = vunpack.c.l.b16 %v272
      %v302 = vunpack.c.l.b16 %v273
      %v303 = vunpack.c.h.b16 %v273
      %v304 = vunpack.c.l.b16 %v274
      %v305 = vpack.c.b16 %v302, %v299
      %v306 = vpack.c.b16 %v303, %v300
      %v307 = vpack.c.b16 %v304, %v301
      %vm311 = vcmask 130048
      %v313 = vsel %vm311, %v291, 0
      %v316 = vsel %vm311, %v292, 0
      %v319 = vsel %vm311, %v293, 0
      %v322 = vsel %vm311, %v294, 0
      %324 = vmatprep.subr.bf16.mxu0 %v306
      %325 = vmatpush1.bf16.msra.mxu0 %v305
      %326 = vmatprep.subr.bf16.mxu0 0
      %327 = vmatpush1.bf16.msra.mxu0 0
      %328 = vmatprep.subr.bf16.mxu0 0
      %329 = vmatpush1.bf16.msra.mxu0 0
      %330 = vmatprep.subr.bf16.mxu0 0
      %331 = vmatpush1.bf16.msra.mxu0 0
      %332 = vmatprep.subr.bf16.mxu0 0
      %333 = vmatpush1.bf16.msra.mxu0 0
      %334 = vmatprep.subr.bf16.mxu0 0
      %335 = vmatpush1.bf16.msra.mxu0 0
      %336 = vmatprep.subr.bf16.mxu0 0
      %337 = vmatpush1.bf16.msra.mxu0 0
      %338 = vmatprep.subr.bf16.mxu0 0
      %339 = vmatpush1.bf16.msra.mxu0 0
      %340 = vmatprep.subr.bf16.mxu0 0
      %341 = vmatpush1.bf16.msra.mxu0 0
      %342 = vmatprep.subr.bf16.mxu0 0
      %343 = vmatpush1.bf16.msra.mxu0 0
      %344 = vmatprep.subr.bf16.mxu0 0
      %345 = vmatpush1.bf16.msra.mxu0 0
      %346 = vmatprep.subr.bf16.mxu0 0
      %347 = vmatpush1.bf16.msra.mxu0 0
      %348 = vmatprep.subr.bf16.mxu0 0
      %349 = vmatpush1.bf16.msra.mxu0 0
      %350 = vmatprep.subr.bf16.mxu0 0
      %351 = vmatpush1.bf16.msra.mxu0 0
      %352 = vmatprep.subr.bf16.mxu0 0
      %353 = vmatpush1.bf16.msra.mxu0 0
      %354 = vmatprep.subr.bf16.mxu0 0
      %355 = vmatpush1.bf16.msra.mxu0 0
      %356 = vmatprep.mubr.bf16.mxu0 0
      %357 = vmatmul.mubr.bf16.gmra.mrb[0].mxu0 %v313
      %v358 = vpop.f32.mrb[0].mxu0
      %v359 = vadd.f32 0.0, %v358
      %v360 = vpop.f32.mrb[0].mxu0
      %v361 = vadd.f32 0.0, %v360
      %v362 = vpop.f32.mrb[0].mxu0
      %v363 = vadd.f32 0.0, %v362
      %v364 = vpop.f32.mrb[0].mxu0
      %v365 = vadd.f32 0.0, %v364
      %366 = vmatprep.mubr.bf16.mxu0 0
      %367 = vmatmul.mubr.bf16.gmra.mrb[0].mxu0 %v316
      %v368 = vpop.f32.mrb[0].mxu0
      %v369 = vadd.f32 0.0, %v368
      %v370 = vpop.f32.mrb[0].mxu0
      %v371 = vadd.f32 0.0, %v370
      %v372 = vpop.f32.mrb[0].mxu0
      %v373 = vadd.f32 0.0, %v372
      %v374 = vpop.f32.mrb[0].mxu0
      %v375 = vadd.f32 0.0, %v374
      %376 = vmatprep.mubr.bf16.mxu0 0
      %377 = vmatmul.mubr.bf16.gmra.mrb[0].mxu0 %v319
      %v378 = vpop.f32.mrb[0].mxu0
      %v379 = vadd.f32 0.0, %v378
      %v380 = vpop.f32.mrb[0].mxu0
      %v381 = vadd.f32 0.0, %v380
      %v382 = vpop.f32.mrb[0].mxu0
      %v383 = vadd.f32 0.0, %v382
      %v384 = vpop.f32.mrb[0].mxu0
      %v385 = vadd.f32 0.0, %v384
      %386 = vmatprep.mubr.bf16.mxu0 0
      %387 = vmatmul.mubr.bf16.gmra.mrb[0].mxu0 %v322
      %v388 = vpop.f32.mrb[0].mxu0
      %v389 = vadd.f32 0.0, %v388
      %v390 = vpop.f32.mrb[0].mxu0
      %v391 = vadd.f32 0.0, %v390
      %v392 = vpop.f32.mrb[0].mxu0
      %v393 = vadd.f32 0.0, %v392
      %v394 = vpop.f32.mrb[0].mxu0
      %v395 = vadd.f32 0.0, %v394
      %396 = vdwg.mxu0
      %397 = vmatprep.subr.bf16.mxu0 0
      %398 = vmatpush1.bf16.msra.mxu0 %v307
      %399 = vmatprep.subr.bf16.mxu0 0
      %400 = vmatpush1.bf16.msra.mxu0 0
      %401 = vmatprep.subr.bf16.mxu0 0
      %402 = vmatpush1.bf16.msra.mxu0 0
      %403 = vmatprep.subr.bf16.mxu0 0
      %404 = vmatpush1.bf16.msra.mxu0 0
      %405 = vmatprep.subr.bf16.mxu0 0
      %406 = vmatpush1.bf16.msra.mxu0 0
      %407 = vmatprep.subr.bf16.mxu0 0
      %408 = vmatpush1.bf16.msra.mxu0 0
      %409 = vmatprep.subr.bf16.mxu0 0
      %410 = vmatpush1.bf16.msra.mxu0 0
      %411 = vmatprep.subr.bf16.mxu0 0
      %412 = vmatpush1.bf16.msra.mxu0 0
      %413 = vmatprep.subr.bf16.mxu0 0
      %414 = vmatpush1.bf16.msra.mxu0 0
      %415 = vmatprep.subr.bf16.mxu0 0
      %416 = vmatpush1.bf16.msra.mxu0 0
      %417 = vmatprep.subr.bf16.mxu0 0
      %418 = vmatpush1.bf16.msra.mxu0 0
      %419 = vmatprep.subr.bf16.mxu0 0
      %420 = vmatpush1.bf16.msra.mxu0 0
      %421 = vmatprep.subr.bf16.mxu0 0
      %422 = vmatpush1.bf16.msra.mxu0 0
      %423 = vmatprep.subr.bf16.mxu0 0
      %424 = vmatpush1.bf16.msra.mxu0 0
      %425 = vmatprep.subr.bf16.mxu0 0
      %426 = vmatpush1.bf16.msra.mxu0 0
      %427 = vmatprep.subr.bf16.mxu0 0
      %428 = vmatpush1.bf16.msra.mxu0 0
      %429 = vmatprep.mubr.bf16.mxu0 0
      %430 = vmatmul.mubr.bf16.gmra.mrb[0].mxu0 %v313
      %v431 = vpop.f32.mrb[0].mxu0
      %v432 = vadd.f32 0.0, %v431
      %v433 = vpop.f32.mrb[0].mxu0
      %v434 = vpop.f32.mrb[0].mxu0
      %v435 = vadd.f32 0.0, %v434
      %v436 = vpop.f32.mrb[0].mxu0
      %437 = vmatprep.mubr.bf16.mxu0 0
      %438 = vmatmul.mubr.bf16.gmra.mrb[0].mxu0 %v316
      %v439 = vpop.f32.mrb[0].mxu0
      %v440 = vadd.f32 0.0, %v439
      %v441 = vpop.f32.mrb[0].mxu0
      %v442 = vpop.f32.mrb[0].mxu0
      %v443 = vadd.f32 0.0, %v442
      %v444 = vpop.f32.mrb[0].mxu0
      %445 = vmatprep.mubr.bf16.mxu0 0
      %446 = vmatmul.mubr.bf16.gmra.mrb[0].mxu0 %v319
      %v447 = vpop.f32.mrb[0].mxu0
      %v448 = vadd.f32 0.0, %v447
      %v449 = vpop.f32.mrb[0].mxu0
      %v450 = vpop.f32.mrb[0].mxu0
      %v451 = vadd.f32 0.0, %v450
      %v452 = vpop.f32.mrb[0].mxu0
      %453 = vmatprep.mubr.bf16.mxu0 0
      %454 = vmatmul.mubr.bf16.gmra.mrb[0].mxu0 %v322
      %v455 = vpop.f32.mrb[0].mxu0
      %v456 = vadd.f32 0.0, %v455
      %v457 = vpop.f32.mrb[0].mxu0
      %v458 = vpop.f32.mrb[0].mxu0
      %v459 = vadd.f32 0.0, %v458
      %v460 = vpop.f32.mrb[0].mxu0
      %461 = vdwg.mxu0
      %v462 = vld [vmem:[%s2] sm:$0xff]
      %v463 = vld [vmem:[%s2 + $0x8] sm:$0xff]
      %v464 = vld [vmem:[%s2 + $0x10] sm:$0xff]
      %v465 = vld [vmem:[%s2 + $0x18] sm:$0xff]
      %v466 = vld [vmem:[%s2 + $0x20] sm:$0xff]
      %v467 = vld [vmem:[%s2 + $0x28] sm:$0xff]
      %v468 = vld [vmem:[%s2 + $0x30] sm:$0xff]
      %v469 = vld [vmem:[%s2 + $0x38] sm:$0xff]
      %v470 = vld [vmem:[%s3] ss:$2 sm:$0x7]
      %s471 = scalar_lea.vmem %s3, 1
      %v472 = vld [vmem:[%s471] ss:$2 sm:$0x7]
      %473 = vrot.lane.b32.xlu0 %v359, 1
      %v474 = vpop.permute.xlu0 %473
      %475 = vrot.lane.b32.xlu0 %v363, 1
      %v476 = vpop.permute.xlu0 %475
      %477 = vrot.lane.b32.xlu0 %v369, 1
      %v478 = vpop.permute.xlu0 %477
      %479 = vrot.lane.b32.xlu0 %v373, 1
      %v480 = vpop.permute.xlu0 %479
      %481 = vrot.lane.b32.xlu0 %v379, 1
      %v482 = vpop.permute.xlu0 %481
      %483 = vrot.lane.b32.xlu0 %v383, 1
      %v484 = vpop.permute.xlu0 %483
      %485 = vrot.lane.b32.xlu0 %v389, 1
      %v486 = vpop.permute.xlu0 %485
      %487 = vrot.lane.b32.xlu0 %v393, 1
      %v488 = vpop.permute.xlu0 %487
      %489 = vrot.lane.b32.xlu0 %v361, 1
      %v490 = vpop.permute.xlu0 %489
      %491 = vrot.lane.b32.xlu0 %v365, 1
      %v492 = vpop.permute.xlu0 %491
      %493 = vrot.lane.b32.xlu0 %v371, 1
      %v494 = vpop.permute.xlu0 %493
      %495 = vrot.lane.b32.xlu0 %v375, 1
      %v496 = vpop.permute.xlu0 %495
      %497 = vrot.lane.b32.xlu0 %v381, 1
      %v498 = vpop.permute.xlu0 %497
      %499 = vrot.lane.b32.xlu0 %v385, 1
      %v500 = vpop.permute.xlu0 %499
      %501 = vrot.lane.b32.xlu0 %v391, 1
      %v502 = vpop.permute.xlu0 %501
      %503 = vrot.lane.b32.xlu0 %v395, 1
      %v504 = vpop.permute.xlu0 %503
      %505 = vrot.lane.b32.xlu0 %v432, 1
      %v506 = vpop.permute.xlu0 %505
      %507 = vrot.lane.b32.xlu0 %v435, 1
      %v508 = vpop.permute.xlu0 %507
      %509 = vrot.lane.b32.xlu0 %v440, 1
      %v510 = vpop.permute.xlu0 %509
      %511 = vrot.lane.b32.xlu0 %v443, 1
      %v512 = vpop.permute.xlu0 %511
      %513 = vrot.lane.b32.xlu0 %v448, 1
      %v514 = vpop.permute.xlu0 %513
      %515 = vrot.lane.b32.xlu0 %v451, 1
      %v516 = vpop.permute.xlu0 %515
      %517 = vrot.lane.b32.xlu0 %v456, 1
      %v518 = vpop.permute.xlu0 %517
      %519 = vrot.lane.b32.xlu0 %v459, 1
      %v520 = vpop.permute.xlu0 %519
      %v521 = vlaneseq
      %v522 = vand.u32 %v521, 127
      %vm523 = vcmp.lt.s32.totalorder %v522, 1
      %v524 = vsel %vm523, %v490, %v506
      %v525 = vsel %vm523, %v492, %v508
      %v526 = vsel %vm523, %v494, %v510
      %v527 = vsel %vm523, %v496, %v512
      %v528 = vsel %vm523, %v498, %v514
      %v529 = vsel %vm523, %v500, %v516
      %v530 = vsel %vm523, %v502, %v518
      %v531 = vsel %vm523, %v504, %v520
      %v532 = vsel %vm523, %v474, %v490
      %v533 = vsel %vm523, %v476, %v492
      %v534 = vsel %vm523, %v478, %v494
      %v535 = vsel %vm523, %v480, %v496
      %v536 = vsel %vm523, %v482, %v498
      %v537 = vsel %vm523, %v484, %v500
      %v538 = vsel %vm523, %v486, %v502
      %v539 = vsel %vm523, %v488, %v504
      %v540 = vsel %vm523, %v506, %v474
      %v541 = vsel %vm523, %v508, %v476
      %v542 = vsel %vm523, %v510, %v478
      %v543 = vsel %vm523, %v512, %v480
      %v544 = vsel %vm523, %v514, %v482
      %v545 = vsel %vm523, %v516, %v484
      %v546 = vsel %vm523, %v518, %v486
      %v547 = vsel %vm523, %v520, %v488
      %v549 = vlaneseq
      %v550 = vshrl.u32 %v549, 7
      %v551 = vsub.s32 0, %v550
      %v552 = vrot.slane %v470, %v551
      %v553 = vlaneseq
      %v554 = vshrl.u32 %v553, 7
      %v555 = vsub.s32 1, %v554
      %v556 = vrot.slane %v470, %v555
      %v557 = vlaneseq
      %v558 = vshrl.u32 %v557, 7
      %v559 = vsub.s32 2, %v558
      %v560 = vrot.slane %v470, %v559
      %v564 = vmul.f32 %v540, %v552
      %v565 = vmul.f32 %v532, %v556
      %v566 = vmul.f32 %v524, %v560
      %v567 = vmul.f32 %v541, %v552
      %v568 = vmul.f32 %v533, %v556
      %v569 = vmul.f32 %v525, %v560
      %v570 = vmul.f32 %v542, %v552
      %v571 = vmul.f32 %v534, %v556
      %v572 = vmul.f32 %v526, %v560
      %v573 = vmul.f32 %v543, %v552
      %v574 = vmul.f32 %v535, %v556
      %v575 = vmul.f32 %v527, %v560
      %v576 = vmul.f32 %v544, %v552
      %v577 = vmul.f32 %v536, %v556
      %v578 = vmul.f32 %v528, %v560
      %v579 = vmul.f32 %v545, %v552
      %v580 = vmul.f32 %v537, %v556
      %v581 = vmul.f32 %v529, %v560
      %v582 = vmul.f32 %v546, %v552
      %v583 = vmul.f32 %v538, %v556
      %v584 = vmul.f32 %v530, %v560
      %v585 = vmul.f32 %v547, %v552
      %v586 = vmul.f32 %v539, %v556
      %v587 = vmul.f32 %v531, %v560
      %588 = vrot.lane.b32.xlu0 %v359, 127
      %v589 = vpop.permute.xlu0 %588
      %590 = vrot.lane.b32.xlu0 %v363, 127
      %v591 = vpop.permute.xlu0 %590
      %592 = vrot.lane.b32.xlu0 %v369, 127
      %v593 = vpop.permute.xlu0 %592
      %594 = vrot.lane.b32.xlu0 %v373, 127
      %v595 = vpop.permute.xlu0 %594
      %596 = vrot.lane.b32.xlu0 %v379, 127
      %v597 = vpop.permute.xlu0 %596
      %598 = vrot.lane.b32.xlu0 %v383, 127
      %v599 = vpop.permute.xlu0 %598
      %600 = vrot.lane.b32.xlu0 %v389, 127
      %v601 = vpop.permute.xlu0 %600
      %602 = vrot.lane.b32.xlu0 %v393, 127
      %v603 = vpop.permute.xlu0 %602
      %604 = vrot.lane.b32.xlu0 %v361, 127
      %v605 = vpop.permute.xlu0 %604
      %606 = vrot.lane.b32.xlu0 %v365, 127
      %v607 = vpop.permute.xlu0 %606
      %608 = vrot.lane.b32.xlu0 %v371, 127
      %v609 = vpop.permute.xlu0 %608
      %610 = vrot.lane.b32.xlu0 %v375, 127
      %v611 = vpop.permute.xlu0 %610
      %612 = vrot.lane.b32.xlu0 %v381, 127
      %v613 = vpop.permute.xlu0 %612
      %614 = vrot.lane.b32.xlu0 %v385, 127
      %v615 = vpop.permute.xlu0 %614
      %616 = vrot.lane.b32.xlu0 %v391, 127
      %v617 = vpop.permute.xlu0 %616
      %618 = vrot.lane.b32.xlu0 %v395, 127
      %v619 = vpop.permute.xlu0 %618
      %620 = vrot.lane.b32.xlu0 %v432, 127
      %v621 = vpop.permute.xlu0 %620
      %622 = vrot.lane.b32.xlu0 %v435, 127
      %v623 = vpop.permute.xlu0 %622
      %624 = vrot.lane.b32.xlu0 %v440, 127
      %v625 = vpop.permute.xlu0 %624
      %626 = vrot.lane.b32.xlu0 %v443, 127
      %v627 = vpop.permute.xlu0 %626
      %628 = vrot.lane.b32.xlu0 %v448, 127
      %v629 = vpop.permute.xlu0 %628
      %630 = vrot.lane.b32.xlu0 %v451, 127
      %v631 = vpop.permute.xlu0 %630
      %632 = vrot.lane.b32.xlu0 %v456, 127
      %v633 = vpop.permute.xlu0 %632
      %634 = vrot.lane.b32.xlu0 %v459, 127
      %v635 = vpop.permute.xlu0 %634
      %vm636 = vcmp.lt.s32.totalorder %v522, 127
      %v637 = vsel %vm636, %v605, %v621
      %v638 = vsel %vm636, %v607, %v623
      %v639 = vsel %vm636, %v609, %v625
      %v640 = vsel %vm636, %v611, %v627
      %v641 = vsel %vm636, %v613, %v629
      %v642 = vsel %vm636, %v615, %v631
      %v643 = vsel %vm636, %v617, %v633
      %v644 = vsel %vm636, %v619, %v635
      %v645 = vsel %vm636, %v589, %v605
      %v646 = vsel %vm636, %v591, %v607
      %v647 = vsel %vm636, %v593, %v609
      %v648 = vsel %vm636, %v595, %v611
      %v649 = vsel %vm636, %v597, %v613
      %v650 = vsel %vm636, %v599, %v615
      %v651 = vsel %vm636, %v601, %v617
      %v652 = vsel %vm636, %v603, %v619
      %v653 = vsel %vm636, %v621, %v589
      %v654 = vsel %vm636, %v623, %v591
      %v655 = vsel %vm636, %v625, %v593
      %v656 = vsel %vm636, %v627, %v595
      %v657 = vsel %vm636, %v629, %v597
      %v658 = vsel %vm636, %v631, %v599
      %v659 = vsel %vm636, %v633, %v601
      %v660 = vsel %vm636, %v635, %v603
      %v662 = vlaneseq
      %v663 = vshrl.u32 %v662, 7
      %v664 = vsub.s32 0, %v663
      %v665 = vrot.slane %v472, %v664
      %v666 = vlaneseq
      %v667 = vshrl.u32 %v666, 7
      %v668 = vsub.s32 1, %v667
      %v669 = vrot.slane %v472, %v668
      %v670 = vlaneseq
      %v671 = vshrl.u32 %v670, 7
      %v672 = vsub.s32 2, %v671
      %v673 = vrot.slane %v472, %v672
      %v677 = vmul.f32 %v645, %v665
      %v678 = vmul.f32 %v637, %v669
      %v679 = vmul.f32 %v653, %v673
      %v680 = vmul.f32 %v646, %v665
      %v681 = vmul.f32 %v638, %v669
      %v682 = vmul.f32 %v654, %v673
      %v683 = vmul.f32 %v647, %v665
      %v684 = vmul.f32 %v639, %v669
      %v685 = vmul.f32 %v655, %v673
      %v686 = vmul.f32 %v648, %v665
      %v687 = vmul.f32 %v640, %v669
      %v688 = vmul.f32 %v656, %v673
      %v689 = vmul.f32 %v649, %v665
      %v690 = vmul.f32 %v641, %v669
      %v691 = vmul.f32 %v657, %v673
      %v692 = vmul.f32 %v650, %v665
      %v693 = vmul.f32 %v642, %v669
      %v694 = vmul.f32 %v658, %v673
      %v695 = vmul.f32 %v651, %v665
      %v696 = vmul.f32 %v643, %v669
      %v697 = vmul.f32 %v659, %v673
      %v698 = vmul.f32 %v652, %v665
      %v699 = vmul.f32 %v644, %v669
      %v700 = vmul.f32 %v660, %v673
      %702 = vset.pattern.permute.xlu0 0
      %703 = vperm.xlu0 %702, %v462
      %v704 = vpop.permute.xlu0 %703
      %707 = vset.pattern.permute.xlu0 0
      %708 = vperm.xlu0 %707, %v463
      %v709 = vpop.permute.xlu0 %708
      %712 = vset.pattern.permute.xlu0 0
      %713 = vperm.xlu0 %712, %v464
      %v714 = vpop.permute.xlu0 %713
      %717 = vset.pattern.permute.xlu0 0
      %718 = vperm.xlu0 %717, %v465
      %v719 = vpop.permute.xlu0 %718
      %722 = vset.pattern.permute.xlu0 0
      %723 = vperm.xlu0 %722, %v466
      %v724 = vpop.permute.xlu0 %723
      %727 = vset.pattern.permute.xlu0 0
      %728 = vperm.xlu0 %727, %v467
      %v729 = vpop.permute.xlu0 %728
      %732 = vset.pattern.permute.xlu0 0
      %733 = vperm.xlu0 %732, %v468
      %v734 = vpop.permute.xlu0 %733
      %737 = vset.pattern.permute.xlu0 0
      %738 = vperm.xlu0 %737, %v469
      %v739 = vpop.permute.xlu0 %738
      %v741 = vmul.f32 %v704, %v564
      %v742 = vmul.f32 %v704, %v565
      %v743 = vmul.f32 %v704, %v566
      %v744 = vmul.f32 %v709, %v567
      %v745 = vmul.f32 %v709, %v568
      %v746 = vmul.f32 %v709, %v569
      %v747 = vmul.f32 %v714, %v570
      %v748 = vmul.f32 %v714, %v571
      %v749 = vmul.f32 %v714, %v572
      %v750 = vmul.f32 %v719, %v573
      %v751 = vmul.f32 %v719, %v574
      %v752 = vmul.f32 %v719, %v575
      %v753 = vmul.f32 %v724, %v576
      %v754 = vmul.f32 %v724, %v577
      %v755 = vmul.f32 %v724, %v578
      %v756 = vmul.f32 %v729, %v579
      %v757 = vmul.f32 %v729, %v580
      %v758 = vmul.f32 %v729, %v581
      %v759 = vmul.f32 %v734, %v582
      %v760 = vmul.f32 %v734, %v583
      %v761 = vmul.f32 %v734, %v584
      %v762 = vmul.f32 %v739, %v585
      %v763 = vmul.f32 %v739, %v586
      %v764 = vmul.f32 %v739, %v587
      %765 = vset.pattern.permute.xlu0 1
      %766 = vperm.xlu0 %765, %v462
      %v767 = vpop.permute.xlu0 %766
      %769 = vset.pattern.permute.xlu0 1
      %770 = vperm.xlu0 %769, %v463
      %v771 = vpop.permute.xlu0 %770
      %773 = vset.pattern.permute.xlu0 1
      %774 = vperm.xlu0 %773, %v464
      %v775 = vpop.permute.xlu0 %774
      %777 = vset.pattern.permute.xlu0 1
      %778 = vperm.xlu0 %777, %v465
      %v779 = vpop.permute.xlu0 %778
      %781 = vset.pattern.permute.xlu0 1
      %782 = vperm.xlu0 %781, %v466
      %v783 = vpop.permute.xlu0 %782
      %785 = vset.pattern.permute.xlu0 1
      %786 = vperm.xlu0 %785, %v467
      %v787 = vpop.permute.xlu0 %786
      %789 = vset.pattern.permute.xlu0 1
      %790 = vperm.xlu0 %789, %v468
      %v791 = vpop.permute.xlu0 %790
      %793 = vset.pattern.permute.xlu0 1
      %794 = vperm.xlu0 %793, %v469
      %v795 = vpop.permute.xlu0 %794
      %v797 = vmul.f32 %v767, %v359
      %v798 = vmul.f32 %v767, %v361
      %v799 = vmul.f32 %v767, %v432
      %v800 = vmul.f32 %v771, %v363
      %v801 = vmul.f32 %v771, %v365
      %v802 = vmul.f32 %v771, %v435
      %v803 = vmul.f32 %v775, %v369
      %v804 = vmul.f32 %v775, %v371
      %v805 = vmul.f32 %v775, %v440
      %v806 = vmul.f32 %v779, %v373
      %v807 = vmul.f32 %v779, %v375
      %v808 = vmul.f32 %v779, %v443
      %v809 = vmul.f32 %v783, %v379
      %v810 = vmul.f32 %v783, %v381
      %v811 = vmul.f32 %v783, %v448
      %v812 = vmul.f32 %v787, %v383
      %v813 = vmul.f32 %v787, %v385
      %v814 = vmul.f32 %v787, %v451
      %v815 = vmul.f32 %v791, %v389
      %v816 = vmul.f32 %v791, %v391
      %v817 = vmul.f32 %v791, %v456
      %v818 = vmul.f32 %v795, %v393
      %v819 = vmul.f32 %v795, %v395
      %v820 = vmul.f32 %v795, %v459
      %v821 = vadd.f32 %v741, %v797
      %v822 = vadd.f32 %v742, %v798
      %v823 = vadd.f32 %v743, %v799
      %v824 = vadd.f32 %v744, %v800
      %v825 = vadd.f32 %v745, %v801
      %v826 = vadd.f32 %v746, %v802
      %v827 = vadd.f32 %v747, %v803
      %v828 = vadd.f32 %v748, %v804
      %v829 = vadd.f32 %v749, %v805
      %v830 = vadd.f32 %v750, %v806
      %v831 = vadd.f32 %v751, %v807
      %v832 = vadd.f32 %v752, %v808
      %v833 = vadd.f32 %v753, %v809
      %v834 = vadd.f32 %v754, %v810
      %v835 = vadd.f32 %v755, %v811
      %v836 = vadd.f32 %v756, %v812
      %v837 = vadd.f32 %v757, %v813
      %v838 = vadd.f32 %v758, %v814
      %v839 = vadd.f32 %v759, %v815
      %v840 = vadd.f32 %v760, %v816
      %v841 = vadd.f32 %v761, %v817
      %v842 = vadd.f32 %v762, %v818
      %v843 = vadd.f32 %v763, %v819
      %v844 = vadd.f32 %v764, %v820
      %845 = vset.pattern.permute.xlu0 2
      %846 = vperm.xlu0 %845, %v462
      %v847 = vpop.permute.xlu0 %846
      %849 = vset.pattern.permute.xlu0 2
      %850 = vperm.xlu0 %849, %v463
      %v851 = vpop.permute.xlu0 %850
      %853 = vset.pattern.permute.xlu0 2
      %854 = vperm.xlu0 %853, %v464
      %v855 = vpop.permute.xlu0 %854
      %857 = vset.pattern.permute.xlu0 2
      %858 = vperm.xlu0 %857, %v465
      %v859 = vpop.permute.xlu0 %858
      %861 = vset.pattern.permute.xlu0 2
      %862 = vperm.xlu0 %861, %v466
      %v863 = vpop.permute.xlu0 %862
      %865 = vset.pattern.permute.xlu0 2
      %866 = vperm.xlu0 %865, %v467
      %v867 = vpop.permute.xlu0 %866
      %869 = vset.pattern.permute.xlu0 2
      %870 = vperm.xlu0 %869, %v468
      %v871 = vpop.permute.xlu0 %870
      %873 = vset.pattern.permute.xlu0 2
      %874 = vperm.xlu0 %873, %v469
      %v875 = vpop.permute.xlu0 %874
      %v877 = vmul.f32 %v847, %v677
      %v878 = vmul.f32 %v847, %v678
      %v879 = vmul.f32 %v847, %v679
      %v880 = vmul.f32 %v851, %v680
      %v881 = vmul.f32 %v851, %v681
      %v882 = vmul.f32 %v851, %v682
      %v883 = vmul.f32 %v855, %v683
      %v884 = vmul.f32 %v855, %v684
      %v885 = vmul.f32 %v855, %v685
      %v886 = vmul.f32 %v859, %v686
      %v887 = vmul.f32 %v859, %v687
      %v888 = vmul.f32 %v859, %v688
      %v889 = vmul.f32 %v863, %v689
      %v890 = vmul.f32 %v863, %v690
      %v891 = vmul.f32 %v863, %v691
      %v892 = vmul.f32 %v867, %v692
      %v893 = vmul.f32 %v867, %v693
      %v894 = vmul.f32 %v867, %v694
      %v895 = vmul.f32 %v871, %v695
      %v896 = vmul.f32 %v871, %v696
      %v897 = vmul.f32 %v871, %v697
      %v898 = vmul.f32 %v875, %v698
      %v899 = vmul.f32 %v875, %v699
      %v900 = vmul.f32 %v875, %v700
      %v901 = vadd.f32 %v821, %v877
      %v902 = vadd.f32 %v822, %v878
      %v903 = vadd.f32 %v823, %v879
      %v904 = vadd.f32 %v824, %v880
      %v905 = vadd.f32 %v825, %v881
      %v906 = vadd.f32 %v826, %v882
      %v907 = vadd.f32 %v827, %v883
      %v908 = vadd.f32 %v828, %v884
      %v909 = vadd.f32 %v829, %v885
      %v910 = vadd.f32 %v830, %v886
      %v911 = vadd.f32 %v831, %v887
      %v912 = vadd.f32 %v832, %v888
      %v913 = vadd.f32 %v833, %v889
      %v914 = vadd.f32 %v834, %v890
      %v915 = vadd.f32 %v835, %v891
      %v916 = vadd.f32 %v836, %v892
      %v917 = vadd.f32 %v837, %v893
      %v918 = vadd.f32 %v838, %v894
      %v919 = vadd.f32 %v839, %v895
      %v920 = vadd.f32 %v840, %v896
      %v921 = vadd.f32 %v841, %v897
      %v922 = vadd.f32 %v842, %v898
      %v923 = vadd.f32 %v843, %v899
      %v924 = vadd.f32 %v844, %v900
      %925 = vset.pattern.permute.xlu0 3
      %926 = vperm.xlu0 %925, %v462
      %v927 = vpop.permute.xlu0 %926
      %929 = vset.pattern.permute.xlu0 3
      %930 = vperm.xlu0 %929, %v463
      %v931 = vpop.permute.xlu0 %930
      %933 = vset.pattern.permute.xlu0 3
      %934 = vperm.xlu0 %933, %v464
      %v935 = vpop.permute.xlu0 %934
      %937 = vset.pattern.permute.xlu0 3
      %938 = vperm.xlu0 %937, %v465
      %v939 = vpop.permute.xlu0 %938
      %941 = vset.pattern.permute.xlu0 3
      %942 = vperm.xlu0 %941, %v466
      %v943 = vpop.permute.xlu0 %942
      %945 = vset.pattern.permute.xlu0 3
      %946 = vperm.xlu0 %945, %v467
      %v947 = vpop.permute.xlu0 %946
      %949 = vset.pattern.permute.xlu0 3
      %950 = vperm.xlu0 %949, %v468
      %v951 = vpop.permute.xlu0 %950
      %953 = vset.pattern.permute.xlu0 3
      %954 = vperm.xlu0 %953, %v469
      %v955 = vpop.permute.xlu0 %954
      %v957 = vmul.f32 %v927, %v564
      %v958 = vmul.f32 %v927, %v565
      %v959 = vmul.f32 %v927, %v566
      %v960 = vmul.f32 %v931, %v567
      %v961 = vmul.f32 %v931, %v568
      %v962 = vmul.f32 %v931, %v569
      %v963 = vmul.f32 %v935, %v570
      %v964 = vmul.f32 %v935, %v571
      %v965 = vmul.f32 %v935, %v572
      %v966 = vmul.f32 %v939, %v573
      %v967 = vmul.f32 %v939, %v574
      %v968 = vmul.f32 %v939, %v575
      %v969 = vmul.f32 %v943, %v576
      %v970 = vmul.f32 %v943, %v577
      %v971 = vmul.f32 %v943, %v578
      %v972 = vmul.f32 %v947, %v579
      %v973 = vmul.f32 %v947, %v580
      %v974 = vmul.f32 %v947, %v581
      %v975 = vmul.f32 %v951, %v582
      %v976 = vmul.f32 %v951, %v583
      %v977 = vmul.f32 %v951, %v584
      %v978 = vmul.f32 %v955, %v585
      %v979 = vmul.f32 %v955, %v586
      %v980 = vmul.f32 %v955, %v587
      %981 = vset.pattern.permute.xlu0 4
      %982 = vperm.xlu0 %981, %v462
      %v983 = vpop.permute.xlu0 %982
      %985 = vset.pattern.permute.xlu0 4
      %986 = vperm.xlu0 %985, %v463
      %v987 = vpop.permute.xlu0 %986
      %989 = vset.pattern.permute.xlu0 4
      %990 = vperm.xlu0 %989, %v464
      %v991 = vpop.permute.xlu0 %990
      %993 = vset.pattern.permute.xlu0 4
      %994 = vperm.xlu0 %993, %v465
      %v995 = vpop.permute.xlu0 %994
      %997 = vset.pattern.permute.xlu0 4
      %998 = vperm.xlu0 %997, %v466
      %v999 = vpop.permute.xlu0 %998
      %1001 = vset.pattern.permute.xlu0 4
      %1002 = vperm.xlu0 %1001, %v467
      %v1003 = vpop.permute.xlu0 %1002
      %1005 = vset.pattern.permute.xlu0 4
      %1006 = vperm.xlu0 %1005, %v468
      %v1007 = vpop.permute.xlu0 %1006
      %1009 = vset.pattern.permute.xlu0 4
      %1010 = vperm.xlu0 %1009, %v469
      %v1011 = vpop.permute.xlu0 %1010
      %v1013 = vmul.f32 %v983, %v359
      %v1014 = vmul.f32 %v983, %v361
      %v1015 = vmul.f32 %v983, %v432
      %v1016 = vmul.f32 %v987, %v363
      %v1017 = vmul.f32 %v987, %v365
      %v1018 = vmul.f32 %v987, %v435
      %v1019 = vmul.f32 %v991, %v369
      %v1020 = vmul.f32 %v991, %v371
      %v1021 = vmul.f32 %v991, %v440
      %v1022 = vmul.f32 %v995, %v373
      %v1023 = vmul.f32 %v995, %v375
      %v1024 = vmul.f32 %v995, %v443
      %v1025 = vmul.f32 %v999, %v379
      %v1026 = vmul.f32 %v999, %v381
      %v1027 = vmul.f32 %v999, %v448
      %v1028 = vmul.f32 %v1003, %v383
      %v1029 = vmul.f32 %v1003, %v385
      %v1030 = vmul.f32 %v1003, %v451
      %v1031 = vmul.f32 %v1007, %v389
      %v1032 = vmul.f32 %v1007, %v391
      %v1033 = vmul.f32 %v1007, %v456
      %v1034 = vmul.f32 %v1011, %v393
      %v1035 = vmul.f32 %v1011, %v395
      %v1036 = vmul.f32 %v1011, %v459
      %v1037 = vadd.f32 %v957, %v1013
      %v1038 = vadd.f32 %v958, %v1014
      %v1039 = vadd.f32 %v959, %v1015
      %v1040 = vadd.f32 %v960, %v1016
      %v1041 = vadd.f32 %v961, %v1017
      %v1042 = vadd.f32 %v962, %v1018
      %v1043 = vadd.f32 %v963, %v1019
      %v1044 = vadd.f32 %v964, %v1020
      %v1045 = vadd.f32 %v965, %v1021
      %v1046 = vadd.f32 %v966, %v1022
      %v1047 = vadd.f32 %v967, %v1023
      %v1048 = vadd.f32 %v968, %v1024
      %v1049 = vadd.f32 %v969, %v1025
      %v1050 = vadd.f32 %v970, %v1026
      %v1051 = vadd.f32 %v971, %v1027
      %v1052 = vadd.f32 %v972, %v1028
      %v1053 = vadd.f32 %v973, %v1029
      %v1054 = vadd.f32 %v974, %v1030
      %v1055 = vadd.f32 %v975, %v1031
      %v1056 = vadd.f32 %v976, %v1032
      %v1057 = vadd.f32 %v977, %v1033
      %v1058 = vadd.f32 %v978, %v1034
      %v1059 = vadd.f32 %v979, %v1035
      %v1060 = vadd.f32 %v980, %v1036
      %1061 = vset.pattern.permute.xlu0 5
      %1062 = vperm.xlu0 %1061, %v462
      %v1063 = vpop.permute.xlu0 %1062
      %1065 = vset.pattern.permute.xlu0 5
      %1066 = vperm.xlu0 %1065, %v463
      %v1067 = vpop.permute.xlu0 %1066
      %1069 = vset.pattern.permute.xlu0 5
      %1070 = vperm.xlu0 %1069, %v464
      %v1071 = vpop.permute.xlu0 %1070
      %1073 = vset.pattern.permute.xlu0 5
      %1074 = vperm.xlu0 %1073, %v465
      %v1075 = vpop.permute.xlu0 %1074
      %1077 = vset.pattern.permute.xlu0 5
      %1078 = vperm.xlu0 %1077, %v466
      %v1079 = vpop.permute.xlu0 %1078
      %1081 = vset.pattern.permute.xlu0 5
      %1082 = vperm.xlu0 %1081, %v467
      %v1083 = vpop.permute.xlu0 %1082
      %1085 = vset.pattern.permute.xlu0 5
      %1086 = vperm.xlu0 %1085, %v468
      %v1087 = vpop.permute.xlu0 %1086
      %1089 = vset.pattern.permute.xlu0 5
      %1090 = vperm.xlu0 %1089, %v469
      %v1091 = vpop.permute.xlu0 %1090
      %v1093 = vmul.f32 %v1063, %v677
      %v1094 = vmul.f32 %v1063, %v678
      %v1095 = vmul.f32 %v1063, %v679
      %v1096 = vmul.f32 %v1067, %v680
      %v1097 = vmul.f32 %v1067, %v681
      %v1098 = vmul.f32 %v1067, %v682
      %v1099 = vmul.f32 %v1071, %v683
      %v1100 = vmul.f32 %v1071, %v684
      %v1101 = vmul.f32 %v1071, %v685
      %v1102 = vmul.f32 %v1075, %v686
      %v1103 = vmul.f32 %v1075, %v687
      %v1104 = vmul.f32 %v1075, %v688
      %v1105 = vmul.f32 %v1079, %v689
      %v1106 = vmul.f32 %v1079, %v690
      %v1107 = vmul.f32 %v1079, %v691
      %v1108 = vmul.f32 %v1083, %v692
      %v1109 = vmul.f32 %v1083, %v693
      %v1110 = vmul.f32 %v1083, %v694
      %v1111 = vmul.f32 %v1087, %v695
      %v1112 = vmul.f32 %v1087, %v696
      %v1113 = vmul.f32 %v1087, %v697
      %v1114 = vmul.f32 %v1091, %v698
      %v1115 = vmul.f32 %v1091, %v699
      %v1116 = vmul.f32 %v1091, %v700
      %v1117 = vadd.f32 %v1037, %v1093
      %v1118 = vadd.f32 %v1038, %v1094
      %v1119 = vadd.f32 %v1039, %v1095
      %v1120 = vadd.f32 %v1040, %v1096
      %v1121 = vadd.f32 %v1041, %v1097
      %v1122 = vadd.f32 %v1042, %v1098
      %v1123 = vadd.f32 %v1043, %v1099
      %v1124 = vadd.f32 %v1044, %v1100
      %v1125 = vadd.f32 %v1045, %v1101
      %v1126 = vadd.f32 %v1046, %v1102
      %v1127 = vadd.f32 %v1047, %v1103
      %v1128 = vadd.f32 %v1048, %v1104
      %v1129 = vadd.f32 %v1049, %v1105
      %v1130 = vadd.f32 %v1050, %v1106
      %v1131 = vadd.f32 %v1051, %v1107
      %v1132 = vadd.f32 %v1052, %v1108
      %v1133 = vadd.f32 %v1053, %v1109
      %v1134 = vadd.f32 %v1054, %v1110
      %v1135 = vadd.f32 %v1055, %v1111
      %v1136 = vadd.f32 %v1056, %v1112
      %v1137 = vadd.f32 %v1057, %v1113
      %v1138 = vadd.f32 %v1058, %v1114
      %v1139 = vadd.f32 %v1059, %v1115
      %v1140 = vadd.f32 %v1060, %v1116
      %1141 = vset.pattern.permute.xlu0 6
      %1142 = vperm.xlu0 %1141, %v462
      %v1143 = vpop.permute.xlu0 %1142
      %1145 = vset.pattern.permute.xlu0 6
      %1146 = vperm.xlu0 %1145, %v463
      %v1147 = vpop.permute.xlu0 %1146
      %1149 = vset.pattern.permute.xlu0 6
      %1150 = vperm.xlu0 %1149, %v464
      %v1151 = vpop.permute.xlu0 %1150
      %1153 = vset.pattern.permute.xlu0 6
      %1154 = vperm.xlu0 %1153, %v465
      %v1155 = vpop.permute.xlu0 %1154
      %1157 = vset.pattern.permute.xlu0 6
      %1158 = vperm.xlu0 %1157, %v466
      %v1159 = vpop.permute.xlu0 %1158
      %1161 = vset.pattern.permute.xlu0 6
      %1162 = vperm.xlu0 %1161, %v467
      %v1163 = vpop.permute.xlu0 %1162
      %1165 = vset.pattern.permute.xlu0 6
      %1166 = vperm.xlu0 %1165, %v468
      %v1167 = vpop.permute.xlu0 %1166
      %1169 = vset.pattern.permute.xlu0 6
      %1170 = vperm.xlu0 %1169, %v469
      %v1171 = vpop.permute.xlu0 %1170
      %v1173 = vmul.f32 %v1143, %v564
      %v1174 = vmul.f32 %v1143, %v565
      %v1175 = vmul.f32 %v1143, %v566
      %v1176 = vmul.f32 %v1147, %v567
      %v1177 = vmul.f32 %v1147, %v568
      %v1178 = vmul.f32 %v1147, %v569
      %v1179 = vmul.f32 %v1151, %v570
      %v1180 = vmul.f32 %v1151, %v571
      %v1181 = vmul.f32 %v1151, %v572
      %v1182 = vmul.f32 %v1155, %v573
      %v1183 = vmul.f32 %v1155, %v574
      %v1184 = vmul.f32 %v1155, %v575
      %v1185 = vmul.f32 %v1159, %v576
      %v1186 = vmul.f32 %v1159, %v577
      %v1187 = vmul.f32 %v1159, %v578
      %v1188 = vmul.f32 %v1163, %v579
      %v1189 = vmul.f32 %v1163, %v580
      %v1190 = vmul.f32 %v1163, %v581
      %v1191 = vmul.f32 %v1167, %v582
      %v1192 = vmul.f32 %v1167, %v583
      %v1193 = vmul.f32 %v1167, %v584
      %v1194 = vmul.f32 %v1171, %v585
      %v1195 = vmul.f32 %v1171, %v586
      %v1196 = vmul.f32 %v1171, %v587
      %1197 = vset.pattern.permute.xlu0 7
      %1198 = vperm.xlu0 %1197, %v462
      %v1199 = vpop.permute.xlu0 %1198
      %1201 = vset.pattern.permute.xlu0 7
      %1202 = vperm.xlu0 %1201, %v463
      %v1203 = vpop.permute.xlu0 %1202
      %1205 = vset.pattern.permute.xlu0 7
      %1206 = vperm.xlu0 %1205, %v464
      %v1207 = vpop.permute.xlu0 %1206
      %1209 = vset.pattern.permute.xlu0 7
      %1210 = vperm.xlu0 %1209, %v465
      %v1211 = vpop.permute.xlu0 %1210
      %1213 = vset.pattern.permute.xlu0 7
      %1214 = vperm.xlu0 %1213, %v466
      %v1215 = vpop.permute.xlu0 %1214
      %1217 = vset.pattern.permute.xlu0 7
      %1218 = vperm.xlu0 %1217, %v467
      %v1219 = vpop.permute.xlu0 %1218
      %1221 = vset.pattern.permute.xlu0 7
      %1222 = vperm.xlu0 %1221, %v468
      %v1223 = vpop.permute.xlu0 %1222
      %1225 = vset.pattern.permute.xlu0 7
      %1226 = vperm.xlu0 %1225, %v469
      %v1227 = vpop.permute.xlu0 %1226
      %v1229 = vmul.f32 %v1199, %v359
      %v1230 = vmul.f32 %v1199, %v361
      %v1231 = vmul.f32 %v1199, %v432
      %v1232 = vmul.f32 %v1203, %v363
      %v1233 = vmul.f32 %v1203, %v365
      %v1234 = vmul.f32 %v1203, %v435
      %v1235 = vmul.f32 %v1207, %v369
      %v1236 = vmul.f32 %v1207, %v371
      %v1237 = vmul.f32 %v1207, %v440
      %v1238 = vmul.f32 %v1211, %v373
      %v1239 = vmul.f32 %v1211, %v375
      %v1240 = vmul.f32 %v1211, %v443
      %v1241 = vmul.f32 %v1215, %v379
      %v1242 = vmul.f32 %v1215, %v381
      %v1243 = vmul.f32 %v1215, %v448
      %v1244 = vmul.f32 %v1219, %v383
      %v1245 = vmul.f32 %v1219, %v385
      %v1246 = vmul.f32 %v1219, %v451
      %v1247 = vmul.f32 %v1223, %v389
      %v1248 = vmul.f32 %v1223, %v391
      %v1249 = vmul.f32 %v1223, %v456
      %v1250 = vmul.f32 %v1227, %v393
      %v1251 = vmul.f32 %v1227, %v395
      %v1252 = vmul.f32 %v1227, %v459
      %v1253 = vadd.f32 %v1173, %v1229
      %v1254 = vadd.f32 %v1174, %v1230
      %v1255 = vadd.f32 %v1175, %v1231
      %v1256 = vadd.f32 %v1176, %v1232
      %v1257 = vadd.f32 %v1177, %v1233
      %v1258 = vadd.f32 %v1178, %v1234
      %v1259 = vadd.f32 %v1179, %v1235
      %v1260 = vadd.f32 %v1180, %v1236
      %v1261 = vadd.f32 %v1181, %v1237
      %v1262 = vadd.f32 %v1182, %v1238
      %v1263 = vadd.f32 %v1183, %v1239
      %v1264 = vadd.f32 %v1184, %v1240
      %v1265 = vadd.f32 %v1185, %v1241
      %v1266 = vadd.f32 %v1186, %v1242
      %v1267 = vadd.f32 %v1187, %v1243
      %v1268 = vadd.f32 %v1188, %v1244
      %v1269 = vadd.f32 %v1189, %v1245
      %v1270 = vadd.f32 %v1190, %v1246
      %v1271 = vadd.f32 %v1191, %v1247
      %v1272 = vadd.f32 %v1192, %v1248
      %v1273 = vadd.f32 %v1193, %v1249
      %v1274 = vadd.f32 %v1194, %v1250
      %v1275 = vadd.f32 %v1195, %v1251
      %v1276 = vadd.f32 %v1196, %v1252
      %1277 = vset.pattern.permute.xlu0 8
      %1278 = vperm.xlu0 %1277, %v462
      %v1279 = vpop.permute.xlu0 %1278
      %1281 = vset.pattern.permute.xlu0 8
      %1282 = vperm.xlu0 %1281, %v463
      %v1283 = vpop.permute.xlu0 %1282
      %1285 = vset.pattern.permute.xlu0 8
      %1286 = vperm.xlu0 %1285, %v464
      %v1287 = vpop.permute.xlu0 %1286
      %1289 = vset.pattern.permute.xlu0 8
      %1290 = vperm.xlu0 %1289, %v465
      %v1291 = vpop.permute.xlu0 %1290
      %1293 = vset.pattern.permute.xlu0 8
      %1294 = vperm.xlu0 %1293, %v466
      %v1295 = vpop.permute.xlu0 %1294
      %1297 = vset.pattern.permute.xlu0 8
      %1298 = vperm.xlu0 %1297, %v467
      %v1299 = vpop.permute.xlu0 %1298
      %1301 = vset.pattern.permute.xlu0 8
      %1302 = vperm.xlu0 %1301, %v468
      %v1303 = vpop.permute.xlu0 %1302
      %1305 = vset.pattern.permute.xlu0 8
      %1306 = vperm.xlu0 %1305, %v469
      %v1307 = vpop.permute.xlu0 %1306
      %v1309 = vmul.f32 %v1279, %v677
      %v1310 = vmul.f32 %v1279, %v678
      %v1311 = vmul.f32 %v1279, %v679
      %v1312 = vmul.f32 %v1283, %v680
      %v1313 = vmul.f32 %v1283, %v681
      %v1314 = vmul.f32 %v1283, %v682
      %v1315 = vmul.f32 %v1287, %v683
      %v1316 = vmul.f32 %v1287, %v684
      %v1317 = vmul.f32 %v1287, %v685
      %v1318 = vmul.f32 %v1291, %v686
      %v1319 = vmul.f32 %v1291, %v687
      %v1320 = vmul.f32 %v1291, %v688
      %v1321 = vmul.f32 %v1295, %v689
      %v1322 = vmul.f32 %v1295, %v690
      %v1323 = vmul.f32 %v1295, %v691
      %v1324 = vmul.f32 %v1299, %v692
      %v1325 = vmul.f32 %v1299, %v693
      %v1326 = vmul.f32 %v1299, %v694
      %v1327 = vmul.f32 %v1303, %v695
      %v1328 = vmul.f32 %v1303, %v696
      %v1329 = vmul.f32 %v1303, %v697
      %v1330 = vmul.f32 %v1307, %v698
      %v1331 = vmul.f32 %v1307, %v699
      %v1332 = vmul.f32 %v1307, %v700
      %v1333 = vadd.f32 %v1253, %v1309
      %v1334 = vadd.f32 %v1254, %v1310
      %v1335 = vadd.f32 %v1255, %v1311
      %v1336 = vadd.f32 %v1256, %v1312
      %v1337 = vadd.f32 %v1257, %v1313
      %v1338 = vadd.f32 %v1258, %v1314
      %v1339 = vadd.f32 %v1259, %v1315
      %v1340 = vadd.f32 %v1260, %v1316
      %v1341 = vadd.f32 %v1261, %v1317
      %v1342 = vadd.f32 %v1262, %v1318
      %v1343 = vadd.f32 %v1263, %v1319
      %v1344 = vadd.f32 %v1264, %v1320
      %v1345 = vadd.f32 %v1265, %v1321
      %v1346 = vadd.f32 %v1266, %v1322
      %v1347 = vadd.f32 %v1267, %v1323
      %v1348 = vadd.f32 %v1268, %v1324
      %v1349 = vadd.f32 %v1269, %v1325
      %v1350 = vadd.f32 %v1270, %v1326
      %v1351 = vadd.f32 %v1271, %v1327
      %v1352 = vadd.f32 %v1272, %v1328
      %v1353 = vadd.f32 %v1273, %v1329
      %v1354 = vadd.f32 %v1274, %v1330
      %v1355 = vadd.f32 %v1275, %v1331
      %v1356 = vadd.f32 %v1276, %v1332
      %1357 = vrot.lane.b32.xlu0 %v901, 16
      %v1358 = vpop.permute.xlu0 %1357
      %1359 = vrot.lane.b32.xlu0 %v904, 16
      %v1360 = vpop.permute.xlu0 %1359
      %1361 = vrot.lane.b32.xlu0 %v907, 16
      %v1362 = vpop.permute.xlu0 %1361
      %1363 = vrot.lane.b32.xlu0 %v910, 16
      %v1364 = vpop.permute.xlu0 %1363
      %1365 = vrot.lane.b32.xlu0 %v913, 16
      %v1366 = vpop.permute.xlu0 %1365
      %1367 = vrot.lane.b32.xlu0 %v916, 16
      %v1368 = vpop.permute.xlu0 %1367
      %1369 = vrot.lane.b32.xlu0 %v919, 16
      %v1370 = vpop.permute.xlu0 %1369
      %1371 = vrot.lane.b32.xlu0 %v922, 16
      %v1372 = vpop.permute.xlu0 %1371
      %1373 = vrot.lane.b32.xlu0 %v902, 16
      %v1374 = vpop.permute.xlu0 %1373
      %1375 = vrot.lane.b32.xlu0 %v905, 16
      %v1376 = vpop.permute.xlu0 %1375
      %1377 = vrot.lane.b32.xlu0 %v908, 16
      %v1378 = vpop.permute.xlu0 %1377
      %1379 = vrot.lane.b32.xlu0 %v911, 16
      %v1380 = vpop.permute.xlu0 %1379
      %1381 = vrot.lane.b32.xlu0 %v914, 16
      %v1382 = vpop.permute.xlu0 %1381
      %1383 = vrot.lane.b32.xlu0 %v917, 16
      %v1384 = vpop.permute.xlu0 %1383
      %1385 = vrot.lane.b32.xlu0 %v920, 16
      %v1386 = vpop.permute.xlu0 %1385
      %1387 = vrot.lane.b32.xlu0 %v923, 16
      %v1388 = vpop.permute.xlu0 %1387
      %1389 = vrot.lane.b32.xlu0 %v903, 16
      %v1390 = vpop.permute.xlu0 %1389
      %1391 = vrot.lane.b32.xlu0 %v906, 16
      %v1392 = vpop.permute.xlu0 %1391
      %1393 = vrot.lane.b32.xlu0 %v909, 16
      %v1394 = vpop.permute.xlu0 %1393
      %1395 = vrot.lane.b32.xlu0 %v912, 16
      %v1396 = vpop.permute.xlu0 %1395
      %1397 = vrot.lane.b32.xlu0 %v915, 16
      %v1398 = vpop.permute.xlu0 %1397
      %1399 = vrot.lane.b32.xlu0 %v918, 16
      %v1400 = vpop.permute.xlu0 %1399
      %1401 = vrot.lane.b32.xlu0 %v921, 16
      %v1402 = vpop.permute.xlu0 %1401
      %1403 = vrot.lane.b32.xlu0 %v924, 16
      %v1404 = vpop.permute.xlu0 %1403
      %vm1405 = vcmp.lt.s32.totalorder %v522, 16
      %v1406 = vsel %vm1405, %v1374, %v1390
      %v1407 = vsel %vm1405, %v1376, %v1392
      %v1408 = vsel %vm1405, %v1378, %v1394
      %v1409 = vsel %vm1405, %v1380, %v1396
      %v1410 = vsel %vm1405, %v1382, %v1398
      %v1411 = vsel %vm1405, %v1384, %v1400
      %v1412 = vsel %vm1405, %v1386, %v1402
      %v1413 = vsel %vm1405, %v1388, %v1404
      %v1414 = vsel %vm1405, %v1358, %v1374
      %v1415 = vsel %vm1405, %v1360, %v1376
      %v1416 = vsel %vm1405, %v1362, %v1378
      %v1417 = vsel %vm1405, %v1364, %v1380
      %v1418 = vsel %vm1405, %v1366, %v1382
      %v1419 = vsel %vm1405, %v1368, %v1384
      %v1420 = vsel %vm1405, %v1370, %v1386
      %v1421 = vsel %vm1405, %v1372, %v1388
      %v1422 = vsel %vm1405, %v1390, %v1358
      %v1423 = vsel %vm1405, %v1392, %v1360
      %v1424 = vsel %vm1405, %v1394, %v1362
      %v1425 = vsel %vm1405, %v1396, %v1364
      %v1426 = vsel %vm1405, %v1398, %v1366
      %v1427 = vsel %vm1405, %v1400, %v1368
      %v1428 = vsel %vm1405, %v1402, %v1370
      %v1429 = vsel %vm1405, %v1404, %v1372
      %v1430 = vadd.f32 %v1117, %v1422
      %v1431 = vadd.f32 %v1118, %v1414
      %v1432 = vadd.f32 %v1119, %v1406
      %v1433 = vadd.f32 %v1120, %v1423
      %v1434 = vadd.f32 %v1121, %v1415
      %v1435 = vadd.f32 %v1122, %v1407
      %v1436 = vadd.f32 %v1123, %v1424
      %v1437 = vadd.f32 %v1124, %v1416
      %v1438 = vadd.f32 %v1125, %v1408
      %v1439 = vadd.f32 %v1126, %v1425
      %v1440 = vadd.f32 %v1127, %v1417
      %v1441 = vadd.f32 %v1128, %v1409
      %v1442 = vadd.f32 %v1129, %v1426
      %v1443 = vadd.f32 %v1130, %v1418
      %v1444 = vadd.f32 %v1131, %v1410
      %v1445 = vadd.f32 %v1132, %v1427
      %v1446 = vadd.f32 %v1133, %v1419
      %v1447 = vadd.f32 %v1134, %v1411
      %v1448 = vadd.f32 %v1135, %v1428
      %v1449 = vadd.f32 %v1136, %v1420
      %v1450 = vadd.f32 %v1137, %v1412
      %v1451 = vadd.f32 %v1138, %v1429
      %v1452 = vadd.f32 %v1139, %v1421
      %v1453 = vadd.f32 %v1140, %v1413
      %1454 = vrot.lane.b32.xlu0 %v1333, 112
      %v1455 = vpop.permute.xlu0 %1454
      %1456 = vrot.lane.b32.xlu0 %v1336, 112
      %v1457 = vpop.permute.xlu0 %1456
      %1458 = vrot.lane.b32.xlu0 %v1339, 112
      %v1459 = vpop.permute.xlu0 %1458
      %1460 = vrot.lane.b32.xlu0 %v1342, 112
      %v1461 = vpop.permute.xlu0 %1460
      %1462 = vrot.lane.b32.xlu0 %v1345, 112
      %v1463 = vpop.permute.xlu0 %1462
      %1464 = vrot.lane.b32.xlu0 %v1348, 112
      %v1465 = vpop.permute.xlu0 %1464
      %1466 = vrot.lane.b32.xlu0 %v1351, 112
      %v1467 = vpop.permute.xlu0 %1466
      %1468 = vrot.lane.b32.xlu0 %v1354, 112
      %v1469 = vpop.permute.xlu0 %1468
      %1470 = vrot.lane.b32.xlu0 %v1334, 112
      %v1471 = vpop.permute.xlu0 %1470
      %1472 = vrot.lane.b32.xlu0 %v1337, 112
      %v1473 = vpop.permute.xlu0 %1472
      %1474 = vrot.lane.b32.xlu0 %v1340, 112
      %v1475 = vpop.permute.xlu0 %1474
      %1476 = vrot.lane.b32.xlu0 %v1343, 112
      %v1477 = vpop.permute.xlu0 %1476
      %1478 = vrot.lane.b32.xlu0 %v1346, 112
      %v1479 = vpop.permute.xlu0 %1478
      %1480 = vrot.lane.b32.xlu0 %v1349, 112
      %v1481 = vpop.permute.xlu0 %1480
      %1482 = vrot.lane.b32.xlu0 %v1352, 112
      %v1483 = vpop.permute.xlu0 %1482
      %1484 = vrot.lane.b32.xlu0 %v1355, 112
      %v1485 = vpop.permute.xlu0 %1484
      %1486 = vrot.lane.b32.xlu0 %v1335, 112
      %v1487 = vpop.permute.xlu0 %1486
      %1488 = vrot.lane.b32.xlu0 %v1338, 112
      %v1489 = vpop.permute.xlu0 %1488
      %1490 = vrot.lane.b32.xlu0 %v1341, 112
      %v1491 = vpop.permute.xlu0 %1490
      %1492 = vrot.lane.b32.xlu0 %v1344, 112
      %v1493 = vpop.permute.xlu0 %1492
      %1494 = vrot.lane.b32.xlu0 %v1347, 112
      %v1495 = vpop.permute.xlu0 %1494
      %1496 = vrot.lane.b32.xlu0 %v1350, 112
      %v1497 = vpop.permute.xlu0 %1496
      %1498 = vrot.lane.b32.xlu0 %v1353, 112
      %v1499 = vpop.permute.xlu0 %1498
      %1500 = vrot.lane.b32.xlu0 %v1356, 112
      %v1501 = vpop.permute.xlu0 %1500
      %vm1502 = vcmp.lt.s32.totalorder %v522, 112
      %v1503 = vsel %vm1502, %v1471, %v1487
      %v1504 = vsel %vm1502, %v1473, %v1489
      %v1505 = vsel %vm1502, %v1475, %v1491
      %v1506 = vsel %vm1502, %v1477, %v1493
      %v1507 = vsel %vm1502, %v1479, %v1495
      %v1508 = vsel %vm1502, %v1481, %v1497
      %v1509 = vsel %vm1502, %v1483, %v1499
      %v1510 = vsel %vm1502, %v1485, %v1501
      %v1511 = vsel %vm1502, %v1455, %v1471
      %v1512 = vsel %vm1502, %v1457, %v1473
      %v1513 = vsel %vm1502, %v1459, %v1475
      %v1514 = vsel %vm1502, %v1461, %v1477
      %v1515 = vsel %vm1502, %v1463, %v1479
      %v1516 = vsel %vm1502, %v1465, %v1481
      %v1517 = vsel %vm1502, %v1467, %v1483
      %v1518 = vsel %vm1502, %v1469, %v1485
      %v1519 = vsel %vm1502, %v1487, %v1455
      %v1520 = vsel %vm1502, %v1489, %v1457
      %v1521 = vsel %vm1502, %v1491, %v1459
      %v1522 = vsel %vm1502, %v1493, %v1461
      %v1523 = vsel %vm1502, %v1495, %v1463
      %v1524 = vsel %vm1502, %v1497, %v1465
      %v1525 = vsel %vm1502, %v1499, %v1467
      %v1526 = vsel %vm1502, %v1501, %v1469
      %v1527 = vadd.f32 %v1430, %v1511
      %v1528 = vadd.f32 %v1431, %v1503
      %v1529 = vadd.f32 %v1432, %v1519
      %v1530 = vadd.f32 %v1433, %v1512
      %v1531 = vadd.f32 %v1434, %v1504
      %v1532 = vadd.f32 %v1435, %v1520
      %v1533 = vadd.f32 %v1436, %v1513
      %v1534 = vadd.f32 %v1437, %v1505
      %v1535 = vadd.f32 %v1438, %v1521
      %v1536 = vadd.f32 %v1439, %v1514
      %v1537 = vadd.f32 %v1440, %v1506
      %v1538 = vadd.f32 %v1441, %v1522
      %v1539 = vadd.f32 %v1442, %v1515
      %v1540 = vadd.f32 %v1443, %v1507
      %v1541 = vadd.f32 %v1444, %v1523
      %v1542 = vadd.f32 %v1445, %v1516
      %v1543 = vadd.f32 %v1446, %v1508
      %v1544 = vadd.f32 %v1447, %v1524
      %v1545 = vadd.f32 %v1448, %v1517
      %v1546 = vadd.f32 %v1449, %v1509
      %v1547 = vadd.f32 %v1450, %v1525
      %v1548 = vadd.f32 %v1451, %v1518
      %v1549 = vadd.f32 %v1452, %v1510
      %v1550 = vadd.f32 %v1453, %v1526
      %v1551 = vmul.f32 %v1527, 0.044715
      %v1552 = vmul.f32 %v1528, 0.044715
      %v1553 = vmul.f32 %v1529, 0.044715
      %v1554 = vmul.f32 %v1530, 0.044715
      %v1555 = vmul.f32 %v1531, 0.044715
      %v1556 = vmul.f32 %v1532, 0.044715
      %v1557 = vmul.f32 %v1533, 0.044715
      %v1558 = vmul.f32 %v1534, 0.044715
      %v1559 = vmul.f32 %v1535, 0.044715
      %v1560 = vmul.f32 %v1536, 0.044715
      %v1561 = vmul.f32 %v1537, 0.044715
      %v1562 = vmul.f32 %v1538, 0.044715
      %v1563 = vmul.f32 %v1551, %v1527
      %v1564 = vmul.f32 %v1552, %v1528
      %v1565 = vmul.f32 %v1553, %v1529
      %v1566 = vmul.f32 %v1554, %v1530
      %v1567 = vmul.f32 %v1555, %v1531
      %v1568 = vmul.f32 %v1556, %v1532
      %v1569 = vmul.f32 %v1557, %v1533
      %v1570 = vmul.f32 %v1558, %v1534
      %v1571 = vmul.f32 %v1559, %v1535
      %v1572 = vmul.f32 %v1560, %v1536
      %v1573 = vmul.f32 %v1561, %v1537
      %v1574 = vmul.f32 %v1562, %v1538
      %v1575 = vmul.f32 %v1563, %v1527
      %v1576 = vmul.f32 %v1564, %v1528
      %v1577 = vmul.f32 %v1565, %v1529
      %v1578 = vmul.f32 %v1566, %v1530
      %v1579 = vmul.f32 %v1567, %v1531
      %v1580 = vmul.f32 %v1568, %v1532
      %v1581 = vmul.f32 %v1569, %v1533
      %v1582 = vmul.f32 %v1570, %v1534
      %v1583 = vmul.f32 %v1571, %v1535
      %v1584 = vmul.f32 %v1572, %v1536
      %v1585 = vmul.f32 %v1573, %v1537
      %v1586 = vmul.f32 %v1574, %v1538
      %v1587 = vadd.f32 %v1527, %v1575
      %v1588 = vadd.f32 %v1528, %v1576
      %v1589 = vadd.f32 %v1529, %v1577
      %v1590 = vadd.f32 %v1530, %v1578
      %v1591 = vadd.f32 %v1531, %v1579
      %v1592 = vadd.f32 %v1532, %v1580
      %v1593 = vadd.f32 %v1533, %v1581
      %v1594 = vadd.f32 %v1534, %v1582
      %v1595 = vadd.f32 %v1535, %v1583
      %v1596 = vadd.f32 %v1536, %v1584
      %v1597 = vadd.f32 %v1537, %v1585
      %v1598 = vadd.f32 %v1538, %v1586
      %v1599 = vmul.f32 %v1587, 0.7978846
      %v1600 = vmul.f32 %v1588, 0.7978846
      %v1601 = vmul.f32 %v1589, 0.7978846
      %v1602 = vmul.f32 %v1590, 0.7978846
      %v1603 = vmul.f32 %v1591, 0.7978846
      %v1604 = vmul.f32 %v1592, 0.7978846
      %v1605 = vmul.f32 %v1593, 0.7978846
      %v1606 = vmul.f32 %v1594, 0.7978846
      %v1607 = vmul.f32 %v1595, 0.7978846
      %v1608 = vmul.f32 %v1596, 0.7978846
      %v1609 = vmul.f32 %v1597, 0.7978846
      %v1610 = vmul.f32 %v1598, 0.7978846
      %v1611 = vtanh.pop %v1599
      %v1612 = vtanh.pop %v1600
      %v1613 = vtanh.pop %v1601
      %v1614 = vtanh.pop %v1602
      %v1615 = vtanh.pop %v1603
      %v1616 = vtanh.pop %v1604
      %v1617 = vtanh.pop %v1605
      %v1618 = vtanh.pop %v1606
      %v1619 = vtanh.pop %v1607
      %v1620 = vtanh.pop %v1608
      %v1621 = vtanh.pop %v1609
      %v1622 = vtanh.pop %v1610
      %v1623 = vadd.f32 %v1611, 1.0
      %v1624 = vadd.f32 %v1612, 1.0
      %v1625 = vadd.f32 %v1613, 1.0
      %v1626 = vadd.f32 %v1614, 1.0
      %v1627 = vadd.f32 %v1615, 1.0
      %v1628 = vadd.f32 %v1616, 1.0
      %v1629 = vadd.f32 %v1617, 1.0
      %v1630 = vadd.f32 %v1618, 1.0
      %v1631 = vadd.f32 %v1619, 1.0
      %v1632 = vadd.f32 %v1620, 1.0
      %v1633 = vadd.f32 %v1621, 1.0
      %v1634 = vadd.f32 %v1622, 1.0
      %v1635 = vmul.f32 %v1527, %v1623
      %v1636 = vmul.f32 %v1528, %v1624
      %v1637 = vmul.f32 %v1529, %v1625
      %v1638 = vmul.f32 %v1530, %v1626
      %v1639 = vmul.f32 %v1531, %v1627
      %v1640 = vmul.f32 %v1532, %v1628
      %v1641 = vmul.f32 %v1533, %v1629
      %v1642 = vmul.f32 %v1534, %v1630
      %v1643 = vmul.f32 %v1535, %v1631
      %v1644 = vmul.f32 %v1536, %v1632
      %v1645 = vmul.f32 %v1537, %v1633
      %v1646 = vmul.f32 %v1538, %v1634
      %v1647 = vmul.f32 %v1635, %v1539
      %v1648 = vmul.f32 %v1636, %v1540
      %v1649 = vmul.f32 %v1637, %v1541
      %v1650 = vmul.f32 %v1638, %v1542
      %v1651 = vmul.f32 %v1639, %v1543
      %v1652 = vmul.f32 %v1640, %v1544
      %v1653 = vmul.f32 %v1641, %v1545
      %v1654 = vmul.f32 %v1642, %v1546
      %v1655 = vmul.f32 %v1643, %v1547
      %v1656 = vmul.f32 %v1644, %v1548
      %v1657 = vmul.f32 %v1645, %v1549
      %v1658 = vmul.f32 %v1646, %v1550
      %v1659 = vld [vmem:[%s4] sm:$0xf]
      %v1660 = vld [vmem:[%s4 + $0x4] sm:$0xf]
      %v1661 = vpack.c.bf16 %v1650, %v1647
      %v1662 = vpack.c.bf16 %v1651, %v1648
      %v1663 = vpack.c.bf16 %v1652, %v1649
      %v1664 = vpack.c.bf16 %v1656, %v1653
      %v1665 = vpack.c.bf16 %v1657, %v1654
      %v1666 = vpack.c.bf16 %v1658, %v1655
      %v1669 = vunpack.c.l.b16 %v1659
      %v1670 = vunpack.c.l.b16 %v1660
      %v1671 = vpack.c.b16 %v1670, %v1669
      %1678 = vrot.lane.b32.xlu0 %v1661, 112
      %v1679 = vpop.permute.xlu0 %1678
      %1680 = vrot.lane.b32.xlu0 %v1662, 112
      %v1681 = vpop.permute.xlu0 %1680
      %1682 = vrot.lane.b32.xlu0 %v1663, 112
      %v1683 = vpop.permute.xlu0 %1682
      %1684 = vrot.lane.b32.xlu0 %v1664, 112
      %v1685 = vpop.permute.xlu0 %1684
      %1686 = vrot.lane.b32.xlu0 %v1665, 112
      %v1687 = vpop.permute.xlu0 %1686
      %1688 = vrot.lane.b32.xlu0 %v1666, 112
      %v1689 = vpop.permute.xlu0 %1688
      %vm1690 = vcmask 916480
      %v1691 = vsel %vm1690, %v1679, %v1681
      %v1692 = vsel %vm1690, %v1681, %v1683
      %v1693 = vsel %vm1690, %v1685, %v1687
      %v1694 = vsel %vm1690, %v1687, %v1689
      %vm1699 = vcmask 261120
      %v1701 = vsel %vm1699, %v1671, 0
      %1703 = vmatprep.subr.bf16.mxu0 %v1692
      %1704 = vmatpush1.bf16.msra.mxu0 %v1691
      %1705 = vmatprep.subr.bf16.mxu0 %v1694
      %1706 = vmatpush1.bf16.msra.mxu0 %v1693
      %1707 = vmatprep.subr.bf16.mxu0 0
      %1708 = vmatpush1.bf16.msra.mxu0 0
      %1709 = vmatprep.subr.bf16.mxu0 0
      %1710 = vmatpush1.bf16.msra.mxu0 0
      %1711 = vmatprep.subr.bf16.mxu0 0
      %1712 = vmatpush1.bf16.msra.mxu0 0
      %1713 = vmatprep.subr.bf16.mxu0 0
      %1714 = vmatpush1.bf16.msra.mxu0 0
      %1715 = vmatprep.subr.bf16.mxu0 0
      %1716 = vmatpush1.bf16.msra.mxu0 0
      %1717 = vmatprep.subr.bf16.mxu0 0
      %1718 = vmatpush1.bf16.msra.mxu0 0
      %1719 = vmatprep.subr.bf16.mxu0 0
      %1720 = vmatpush1.bf16.msra.mxu0 0
      %1721 = vmatprep.subr.bf16.mxu0 0
      %1722 = vmatpush1.bf16.msra.mxu0 0
      %1723 = vmatprep.subr.bf16.mxu0 0
      %1724 = vmatpush1.bf16.msra.mxu0 0
      %1725 = vmatprep.subr.bf16.mxu0 0
      %1726 = vmatpush1.bf16.msra.mxu0 0
      %1727 = vmatprep.subr.bf16.mxu0 0
      %1728 = vmatpush1.bf16.msra.mxu0 0
      %1729 = vmatprep.subr.bf16.mxu0 0
      %1730 = vmatpush1.bf16.msra.mxu0 0
      %1731 = vmatprep.subr.bf16.mxu0 0
      %1732 = vmatpush1.bf16.msra.mxu0 0
      %1733 = vmatprep.subr.bf16.mxu0 0
      %1734 = vmatpush1.bf16.msra.mxu0 0
      %1735 = vmatprep.mubr.bf16.mxu0 0
      %1736 = vmatmul.mubr.bf16.gmra.mrb[0].mxu0 %v1701
      %v1737 = vpop.f32.mrb[0].mxu0
      %v1738 = vadd.f32 0.0, %v1737
      %v1739 = vpop.f32.mrb[0].mxu0
      %v1740 = vadd.f32 0.0, %v1739
      %v1741 = vpop.f32.mrb[0].mxu0
      %v1742 = vadd.f32 0.0, %v1741
      %v1743 = vpop.f32.mrb[0].mxu0
      %v1744 = vadd.f32 0.0, %v1743
      %1745 = vdwg.mxu0
      %1746 = vst [vmem:[%s260] sm:$0xff] %v1738
      %1747 = vst [vmem:[%s260 + $0x8] sm:$0xff] %v1740
      %1748 = vst [vmem:[%s260 + $0x10] sm:$0xff] %v1742
      %1749 = vst [vmem:[%s260 + $0x18] sm:$0xff] %v1744
      %s1750 = smul.u32 2, %s21
      %p1751 = scmp.lt.s32.totalorder %s20, 1
      %s1752 = scalar_select %p1751, %s20, 1
      %p1753 = scmp.lt.s32.totalorder %s1750, 1
      %s1754 = scalar_select %p1753, %s1750, 1
      %s1755 = smul.addr %s1752, 4
      %s1756 = sadd.s32 %s1754, %s1755
      %s1757 = smul.addr %s1756, 8
      %s1758 = scalar_lea.vmem %s5, %s1757
      // Predicated region
      $region41: #{feedforward2_forward.1} parent=39 // pred_check
        %p1759 = pneg %p160
      $region42: #{feedforward2_forward.1} parent=39 // pred_check_branch
        %1761 = sbr.rel (%p1759) target = $region44
      $region43: #{feedforward2_forward.1} parent=39 // pred_region
        %s1762 = smul.u32 2, %s21
      $region44: #{feedforward2_forward.1} parent=39 // pred_fallthru
        _
    $region40: #{feedforward2_forward.1} parent=5 // pred_fallthru
      _
    %p1763 = scmp.le.s32.totalorder 2, %s11
    // Predicated region
    $region45: #{feedforward2_forward.1} parent=5 // pred_check
      %p1764 = pneg %p1763
    $region46: #{feedforward2_forward.1} parent=5 // pred_check_branch
      %1766 = sbr.rel (%p1764) target = $region48
    $region47: #{feedforward2_forward.1} parent=5 // pred_region
      %s1767 = ssub.s32 %s11, 2
      // Predicated region
      $region49: #{feedforward2_forward.1} parent=47 // pred_check
        %p1768 = pneg %p166
      $region50: #{feedforward2_forward.1} parent=47 // pred_check_branch
        %1770 = sbr.rel (%p1768) target = $region52
      $region51: #{feedforward2_forward.1} parent=47 // pred_region
        %s1771 = smul.u32 2, %s23
        %p1772 = scmp.lt.s32.totalorder %s22, 1
        %s1773 = scalar_select %p1772, %s22, 1
        %p1774 = scmp.lt.s32.totalorder %s1771, 1
        %s1775 = scalar_select %p1774, %s1771, 1
        %s1776 = smul.addr %s1773, 4
        %s1777 = sadd.s32 %s1775, %s1776
        %s1778 = smul.addr %s1777, 8
        %s1779 = scalar_lea.vmem %s5, %s1778
      $region52: #{feedforward2_forward.1} parent=47 // pred_fallthru
        _
    $region48: #{feedforward2_forward.1} parent=5 // pred_fallthru
      _
  $region6: #{feedforward2_forward.1} parent=0 // loop_footer
    %s15 = sadd.s32 1, %s11
  $region7: #{feedforward2_forward.1} parent=0 // loop_footer_branch
    %10 = sbr.rel target = $region3
  $region8: #{feedforward2_forward.1} parent=0 // loop_exit
    _

</llo_original>
